<compile_context>
chip_gen: v7x
topology: tpu7x:2x2x1
jax: 0.10.0
libtpu: 0.0.40
codegen_flags: <defaults>
</compile_context>

<pallas_src>
import jax
import jax.numpy as jnp
from jax.experimental import pallas as pl
from jax.experimental.pallas import tpu as pltpu


def _round_up(x: int, m: int) -> int:
    return ((x + m - 1) // m) * m


def _pick_row_tile(n: int, d_pad: int, hid_pad: int):
    """Choose the row tile TN and a matching VMEM limit.

    Per-row VMEM with default double-buffering of the row-tiled operands:
      x tile (bf16) + recon tile (f32) + emb tile (f32), each x2 buffers.
    Weights/biases sit at a constant block index (fetched once) but are still
    allocated double-buffered by default.
    """
    per_row = 2 * (d_pad * 2 + d_pad * 4 + hid_pad * 4)
    weight_bytes = 2 * (2 * d_pad * hid_pad * 2 + (hid_pad + d_pad) * 4)

    budget = 32 * 1024 * 1024  # conservative across v5e/v6e/v7x scoped VMEM
    tn = 1024
    while tn > 128 and weight_bytes + tn * per_row > budget:
        tn //= 2
    # Don't over-pad tiny batches: a single lane-aligned tile of >=128 rows.
    tn = min(tn, max(128, _round_up(n, 128)))

    vmem_need = weight_bytes + tn * per_row + (2 << 20)  # + headroom
    vmem_limit = int(min(max(vmem_need, 16 * 1024 * 1024), 56 * 1024 * 1024))
    return tn, vmem_limit


def autoencoder_kernel(x_ref, we_ref, be_ref, wd_ref, bd_ref, out_ref, emb_ref):
    """Fused encoder matmul + ReLU + decoder matmul for one row tile.

    x_ref  : (TN, Dp)    bf16 flattened input rows
    we_ref : (Dp, HIDp)  bf16 encoder weight   (VMEM-resident, constant index)
    be_ref : (1, HIDp)   f32  encoder bias
    wd_ref : (HIDp, Dp)  bf16 decoder weight   (VMEM-resident, constant index)
    bd_ref : (1, Dp)     f32  decoder bias
    out_ref: (TN, Dp)    reconstruction
    emb_ref: (TN, HIDp)  embedding (what `embed` / `encode` would return)
    """
    # Hoist bias loads once per tile (f32); broadcasts happen inside the adds.
    b_enc = be_ref[...]
    b_dec = bd_ref[...]

    # Encoder: bf16 x bf16 -> f32 accumulation on the MXU.
    h = jnp.dot(x_ref[...], we_ref[...], preferred_element_type=jnp.float32)
    # Bias + ReLU in f32 on the VPU (no bf16 VPU dependence; exact on v5e too).
    h = jnp.maximum(h + b_enc, 0.0)
    emb_ref[...] = h.astype(emb_ref.dtype)

    # Decoder: cast activations to bf16 for the MXU, accumulate in f32.
    y = jnp.dot(h.astype(wd_ref.dtype), wd_ref[...],
                preferred_element_type=jnp.float32)
    out_ref[...] = (y + b_dec).astype(out_ref.dtype)


def autoencoder_forward(x_nchw, w_enc, b_enc, w_dec, b_dec,
                        *, compute_dtype=jnp.bfloat16):
    """Runs the fused autoencoder kernel.  Returns (reconstruction_NCHW, emb)."""
    n, c, h, w = x_nchw.shape
    d = c * h * w
    hid = w_enc.shape[1]
    out_dtype = x_nchw.dtype
    out_isize = jnp.dtype(out_dtype).itemsize

    # Lane-friendly padded sizes.
    d_pad = _round_up(d, 128)
    hid_pad = _round_up(hid, 128)
    tn, vmem_limit = _pick_row_tile(n, d_pad, hid_pad)
    n_pad = _round_up(n, tn)
    grid = (n_pad // tn,)

    # Glue reshapes / zero-padding / casts (plain JAX, outside the kernel).
    # Zero padding changes no results: padded HID columns of W_enc and rows of
    # W_dec are zero, padded rows/cols are sliced off below.
    x_flat = x_nchw.reshape(n, d).astype(compute_dtype)
    xp = jnp.pad(x_flat, ((0, n_pad - n), (0, d_pad - d)))
    wep = jnp.pad(w_enc.astype(compute_dtype), ((0, d_pad - d), (0, hid_pad - hid)))
    wdp = jnp.pad(w_dec.astype(compute_dtype), ((0, hid_pad - hid), (0, d_pad - d)))
    bep = jnp.pad(b_enc.astype(jnp.float32), (0, hid_pad - hid)).reshape(1, hid_pad)
    bdp = jnp.pad(b_dec.astype(jnp.float32), (0, d_pad - d)).reshape(1, d_pad)

    w_isize = jnp.dtype(compute_dtype).itemsize
    cost = pl.CostEstimate(
        flops=4 * n_pad * d_pad * hid_pad,          # two matmuls, 2*M*K*N each
        transcendentals=0,
        bytes_accessed=(
            n_pad * d_pad * (w_isize + out_isize)    # x in, recon out
            + n_pad * hid_pad * out_isize            # emb out
            + 2 * d_pad * hid_pad * w_isize          # W_enc + W_dec
            + (hid_pad + d_pad) * 4                  # biases
        ),
    )

    recon_p, emb_p = pl.pallas_call(
        autoencoder_kernel,
        out_shape=(
            jax.ShapeDtypeStruct((n_pad, d_pad), out_dtype),
            jax.ShapeDtypeStruct((n_pad, hid_pad), out_dtype),
        ),
        grid_spec=pltpu.PrefetchScalarGridSpec(
            num_scalar_prefetch=0,
            grid=grid,
            in_specs=[
                pl.BlockSpec((tn, d_pad), lambda i: (i, 0)),       # x rows (pipelined)
                pl.BlockSpec((d_pad, hid_pad), lambda i: (0, 0)),  # W_enc (resident)
                pl.BlockSpec((1, hid_pad), lambda i: (0, 0)),      # b_enc
                pl.BlockSpec((hid_pad, d_pad), lambda i: (0, 0)),  # W_dec (resident)
                pl.BlockSpec((1, d_pad), lambda i: (0, 0)),        # b_dec
            ],
            out_specs=[
                pl.BlockSpec((tn, d_pad), lambda i: (i, 0)),       # reconstruction
                pl.BlockSpec((tn, hid_pad), lambda i: (i, 0)),     # embedding
            ],
        ),
        compiler_params=pltpu.CompilerParams(
            dimension_semantics=("parallel",),   # row tiles are independent
            vmem_limit_bytes=vmem_limit,
        ),
        cost_estimate=cost,
    )(xp, wep, bep, wdp, bdp)

    recon = recon_p[:n, :d].reshape(n, c, h, w)
    emb = emb_p[:n, :hid]
    return recon, emb


if __name__ == "__main__":
    # Small deterministic shapes consistent with an NCHW autoencoder input.
    N, C, H, W = 2, 4, 16, 16
    D = C * H * W          # 1024
    HID = 32

    key = jax.random.PRNGKey(0)
    kx, kwe, kbe, kwd, kbd = jax.random.split(key, 5)

    x = jax.random.normal(kx, (N, C, H, W), dtype=jnp.float32)
    w_enc = jax.random.normal(kwe, (D, HID), dtype=jnp.float32) * 0.02
    b_enc = jax.random.normal(kbe, (HID,), dtype=jnp.float32) * 0.02
    w_dec = jax.random.normal(kwd, (HID, D), dtype=jnp.float32) * 0.02
    b_dec = jax.random.normal(kbd, (D,), dtype=jnp.float32) * 0.02

    recon, emb = autoencoder_forward(x, w_enc, b_enc, w_dec, b_dec)
    jax.block_until_ready((recon, emb))

    # Pure-JAX f32 reference of the same math (kernel uses bf16 operands with
    # f32 accumulation, so tolerances are loosened accordingly).
    x_flat = x.reshape(N, D)
    h_ref = jnp.maximum(x_flat @ w_enc + b_enc, 0.0)
    recon_ref = (h_ref @ w_dec + b_dec).reshape(N, C, H, W)

    assert recon.shape == (N, C, H, W)
    assert emb.shape == (N, HID)
    assert jnp.allclose(recon, recon_ref, atol=5e-2, rtol=5e-2)
    assert jnp.allclose(emb, h_ref, atol=5e-2, rtol=5e-2)

    print("KERNEL_OK")
</pallas_src>

<mosaic_0001>
module attributes {stable_mosaic.version = 11 : i64} {
  func.func @autoencoder_kernel(%arg0: i32, %arg1: memref<128x1024xbf16, #tpu.memory_space<vmem>>, %arg2: memref<1024x128xbf16, #tpu.memory_space<vmem>>, %arg3: memref<1x128xf32, #tpu.memory_space<vmem>>, %arg4: memref<128x1024xbf16, #tpu.memory_space<vmem>>, %arg5: memref<1x1024xf32, #tpu.memory_space<vmem>>, %arg6: memref<128x1024xf32, #tpu.memory_space<vmem>>, %arg7: memref<128x128xf32, #tpu.memory_space<vmem>>) attributes {dimension_semantics = [#tpu.dimension_semantics<parallel>], iteration_bounds = array<i64: 1>, scalar_prefetch = 0 : i64, scratch_operands = 0 : i64, tpu.core_type = #tpu.core_type<tc>, window_params = [{transform_indices = @transform_0, window_bounds = array<i64: 128, 1024>}, {pipeline_mode = #tpu.pipeline_mode<synchronous>, transform_indices = @transform_1, window_bounds = array<i64: 1024, 128>}, {pipeline_mode = #tpu.pipeline_mode<synchronous>, transform_indices = @transform_2, window_bounds = array<i64: 1, 128>}, {pipeline_mode = #tpu.pipeline_mode<synchronous>, transform_indices = @transform_3, window_bounds = array<i64: 128, 1024>}, {pipeline_mode = #tpu.pipeline_mode<synchronous>, transform_indices = @transform_4, window_bounds = array<i64: 1, 1024>}, {transform_indices = @transform_5, window_bounds = array<i64: 128, 1024>}, {transform_indices = @transform_6, window_bounds = array<i64: 128, 128>}]} {
    %c0 = arith.constant 0 : index
    %c0_0 = arith.constant 0 : index
    %0 = vector.load %arg3[%c0, %c0_0] : memref<1x128xf32, #tpu.memory_space<vmem>>, vector<1x128xf32>
    %c0_1 = arith.constant 0 : index
    %c0_2 = arith.constant 0 : index
    %1 = vector.load %arg5[%c0_1, %c0_2] : memref<1x1024xf32, #tpu.memory_space<vmem>>, vector<1x1024xf32>
    %c0_3 = arith.constant 0 : index
    %c0_4 = arith.constant 0 : index
    %2 = vector.load %arg1[%c0_3, %c0_4] : memref<128x1024xbf16, #tpu.memory_space<vmem>>, vector<128x1024xbf16>
    %c0_5 = arith.constant 0 : index
    %c0_6 = arith.constant 0 : index
    %3 = vector.load %arg2[%c0_5, %c0_6] : memref<1024x128xbf16, #tpu.memory_space<vmem>>, vector<1024x128xbf16>
    %cst = arith.constant dense<0.000000e+00> : vector<128x128xf32>
    %4 = tpu.matmul %2, %3, %cst {dimension_numbers = #tpu.dot_dimension_numbers<[1], [0], [0], [1], [0, 0, 1, 1], [], []>} : vector<128x1024xbf16>, vector<1024x128xbf16>, vector<128x128xf32> -> vector<128x128xf32>
    %5 = vector.broadcast %0 : vector<1x128xf32> to vector<128x128xf32>
    %6 = arith.addf %4, %5 : vector<128x128xf32>
    %cst_7 = arith.constant 0.000000e+00 : f32
    %7 = vector.broadcast %cst_7 : f32 to vector<128x128xf32>
    %8 = arith.maximumf %6, %7 : vector<128x128xf32>
    %c0_8 = arith.constant 0 : index
    %c0_9 = arith.constant 0 : index
    %9 = vector.load %arg7[%c0_8, %c0_9] : memref<128x128xf32, #tpu.memory_space<vmem>>, vector<128x128xf32>
    tpu.vector_store %arg7[%c0_8, %c0_9], %8 {strides = array<i32>} : memref<128x128xf32, #tpu.memory_space<vmem>>, vector<128x128xf32>,
    %10 = arith.truncf %8 : vector<128x128xf32> to vector<128x128xbf16>
    %c0_10 = arith.constant 0 : index
    %c0_11 = arith.constant 0 : index
    %11 = vector.load %arg4[%c0_10, %c0_11] : memref<128x1024xbf16, #tpu.memory_space<vmem>>, vector<128x1024xbf16>
    %cst_12 = arith.constant dense<0.000000e+00> : vector<128x1024xf32>
    %12 = tpu.matmul %10, %11, %cst_12 {dimension_numbers = #tpu.dot_dimension_numbers<[1], [0], [0], [1], [0, 0, 1, 1], [], []>} : vector<128x128xbf16>, vector<128x1024xbf16>, vector<128x1024xf32> -> vector<128x1024xf32>
    %13 = vector.broadcast %1 : vector<1x1024xf32> to vector<128x1024xf32>
    %14 = arith.addf %12, %13 : vector<128x1024xf32>
    %c0_13 = arith.constant 0 : index
    %c0_14 = arith.constant 0 : index
    %15 = vector.load %arg6[%c0_13, %c0_14] : memref<128x1024xf32, #tpu.memory_space<vmem>>, vector<128x1024xf32>
    tpu.vector_store %arg6[%c0_13, %c0_14], %14 {strides = array<i32>} : memref<128x1024xf32, #tpu.memory_space<vmem>>, vector<128x1024xf32>,
    return
  }
  func.func @transform_0(%arg0: i32) -> (i32, i32) {
    %c0_i32 = arith.constant 0 : i32
    %c0_i32_0 = arith.constant 0 : i32
    return %arg0, %c0_i32 : i32, i32
  }
  func.func @transform_1(%arg0: i32) -> (i32, i32) {
    %c0_i32 = arith.constant 0 : i32
    %c0_i32_0 = arith.constant 0 : i32
    %c0_i32_1 = arith.constant 0 : i32
    return %c0_i32, %c0_i32_0 : i32, i32
  }
  func.func @transform_2(%arg0: i32) -> (i32, i32) {
    %c0_i32 = arith.constant 0 : i32
    %c0_i32_0 = arith.constant 0 : i32
    %c0_i32_1 = arith.constant 0 : i32
    return %c0_i32, %c0_i32_0 : i32, i32
  }
  func.func @transform_3(%arg0: i32) -> (i32, i32) {
    %c0_i32 = arith.constant 0 : i32
    %c0_i32_0 = arith.constant 0 : i32
    %c0_i32_1 = arith.constant 0 : i32
    return %c0_i32, %c0_i32_0 : i32, i32
  }
  func.func @transform_4(%arg0: i32) -> (i32, i32) {
    %c0_i32 = arith.constant 0 : i32
    %c0_i32_0 = arith.constant 0 : i32
    %c0_i32_1 = arith.constant 0 : i32
    return %c0_i32, %c0_i32_0 : i32, i32
  }
  func.func @transform_5(%arg0: i32) -> (i32, i32) {
    %c0_i32 = arith.constant 0 : i32
    %c0_i32_0 = arith.constant 0 : i32
    return %arg0, %c0_i32 : i32, i32
  }
  func.func @transform_6(%arg0: i32) -> (i32, i32) {
    %c0_i32 = arith.constant 0 : i32
    %c0_i32_0 = arith.constant 0 : i32
    return %arg0, %c0_i32 : i32, i32
  }
}

</mosaic_0001>

<llo_original>
// kernel: tpu_custom_call.1
$region0: #{tpu_custom_call.1}
  #allocation0 [shape = 'u32[]', space=smem, size = 0x4, offset = 0x4, fixed_abs, tag = 'smem constant byte address 0x4 - core index']
  #allocation1 [shape = 'u32[144,128]{1,0:T(1,128)}', space=vmem, size = 0x12000, scoped, tag = 'internal scratch']
  %s0 = inlined_call_operand.hbm [shape: bf16[128,1024], index: 0, kind: input, shape index: {}]
  %s1 = inlined_call_operand.hbm [shape: bf16[1024,128], index: 1, kind: input, shape index: {}]
  %s2 = inlined_call_operand.vmem [shape: f32[1,128], index: 2, kind: input, shape index: {}]
  %s3 = inlined_call_operand.hbm [shape: bf16[128,1024], index: 3, kind: input, shape index: {}]
  %s4 = inlined_call_operand.vmem [shape: f32[1,1024], index: 4, kind: input, shape index: {}]
  %s5 = inlined_call_operand.hbm [shape: f32[128,1024], index: 5, kind: output, shape index: {0}]
  %s6 = inlined_call_operand.hbm [shape: f32[128,128], index: 6, kind: output, shape index: {1}]
  %7 = xla_tuple %s5, %s6
  %s8 = sld [smem:[#allocation0]]
  $region50: #{tpu_custom_call.1} parent=0
    _
  %s10 = ssub.s32 1, %s8
  %s11 = scalar_select 0, %s10, %s8
  $region1: #{tpu_custom_call.1} parent=0
    #allocation2 [shape = 'u8[262144]{0}', space=vmem, size = 0x40000, scoped, tag = 'input window, operand 0, single buffered']
    #allocation3 [shape = 's32[1]{0}', space=sflag, size = 0x4, scoped, tag = 'scoped memory for tpu_custom_call.1']
    #allocation4 [shape = 's32[1]{0}', space=sflag, size = 0x4, scoped, tag = 'scoped memory for tpu_custom_call.1']
    #allocation5 [shape = 'u8[262144]{0}', space=vmem, size = 0x40000, scoped, tag = 'input window, operand 1, single buffered']
    #allocation6 [shape = 's32[1]{0}', space=sflag, size = 0x4, scoped, tag = 'scoped memory for tpu_custom_call.1']
    #allocation7 [shape = 'u8[262144]{0}', space=vmem, size = 0x40000, scoped, tag = 'input window, operand 3, single buffered']
    #allocation8 [shape = 'u8[524288]{0}', space=vmem, size = 0x80000, scoped, tag = 'output window, operand 0, single buffered']
    #allocation9 [shape = 'u8[65536]{0}', space=vmem, size = 0x10000, scoped, tag = 'output window, operand 1, single buffered']
    #allocation10 [shape = 's32[1]{0}', space=sflag, size = 0x4, scoped, tag = 'scoped memory for tpu_custom_call.1']
    %12 = vsyncpa [#allocation3], 0
    %13 = vsyncpa [#allocation6], 0
    %14 = vsyncpa [#allocation4], 0
    %15 = vsyncpa [#allocation10], 0
    // Predicated region
    $region2: #{tpu_custom_call.1} parent=1 // pred_check
      _
    $region3: #{tpu_custom_call.1} parent=1 // pred_check_branch
      %17 = sbr.rel (0) target = $region5
    $region4: #{tpu_custom_call.1} parent=1 // pred_region
      %s19 = ssub.s32 8192, 8192
      %20 = vsyncadd [#allocation3], %s19
      %s21 = sshll.u32 [#allocation2], 4
      %s22 = int_to_ptr.vmem [resolvable:$true] %s21
      %27 = dma.hbm_to_vmem [thread:$0]  %s0, 8192, %s22, [#allocation3], 512, 512, 32
    $region5: #{tpu_custom_call.1} parent=1 // pred_fallthru
      _
    // Predicated region
    $region6: #{tpu_custom_call.1} parent=1 // pred_check
      _
    $region7: #{tpu_custom_call.1} parent=1 // pred_check_branch
      %29 = sbr.rel (0) target = $region9
    $region8: #{tpu_custom_call.1} parent=1 // pred_region
      %s31 = ssub.s32 8192, 8192
      %32 = vsyncadd [#allocation6], %s31
      %s33 = sshll.u32 [#allocation5], 4
      %s34 = int_to_ptr.vmem [resolvable:$true] %s33
      %39 = dma.hbm_to_vmem [thread:$0]  %s1, 8192, %s34, [#allocation6], 64, 64, 4
    $region9: #{tpu_custom_call.1} parent=1 // pred_fallthru
      _
    // Predicated region
    $region10: #{tpu_custom_call.1} parent=1 // pred_check
      _
    $region11: #{tpu_custom_call.1} parent=1 // pred_check_branch
      %41 = sbr.rel (0) target = $region13
    $region12: #{tpu_custom_call.1} parent=1 // pred_region
      _
    $region13: #{tpu_custom_call.1} parent=1 // pred_fallthru
      _
    // Predicated region
    $region14: #{tpu_custom_call.1} parent=1 // pred_check
      _
    $region15: #{tpu_custom_call.1} parent=1 // pred_check_branch
      %43 = sbr.rel (0) target = $region17
    $region16: #{tpu_custom_call.1} parent=1 // pred_region
      %s45 = ssub.s32 8192, 8192
      %46 = vsyncadd [#allocation6], %s45
      %s47 = sshll.u32 [#allocation7], 4
      %s48 = int_to_ptr.vmem [resolvable:$true] %s47
      %53 = dma.hbm_to_vmem [thread:$0]  %s3, 8192, %s48, [#allocation6], 512, 512, 32
    $region17: #{tpu_custom_call.1} parent=1 // pred_fallthru
      _
    // Predicated region
    $region18: #{tpu_custom_call.1} parent=1 // pred_check
      _
    $region19: #{tpu_custom_call.1} parent=1 // pred_check_branch
      %55 = sbr.rel (0) target = $region21
    $region20: #{tpu_custom_call.1} parent=1 // pred_region
      _
    $region21: #{tpu_custom_call.1} parent=1 // pred_fallthru
      _
    // Predicated region
    $region22: #{tpu_custom_call.1} parent=1 // pred_check
      _
    $region23: #{tpu_custom_call.1} parent=1 // pred_check_branch
      %57 = sbr.rel (0) target = $region25
    $region24: #{tpu_custom_call.1} parent=1 // pred_region
      %58 = dma.done [#allocation3], 8192
    $region25: #{tpu_custom_call.1} parent=1 // pred_fallthru
      _
    // Predicated region
    $region26: #{tpu_custom_call.1} parent=1 // pred_check
      _
    $region27: #{tpu_custom_call.1} parent=1 // pred_check_branch
      %60 = sbr.rel (0) target = $region29
    $region28: #{tpu_custom_call.1} parent=1 // pred_region
      %61 = dma.done [#allocation6], 8192
    $region29: #{tpu_custom_call.1} parent=1 // pred_fallthru
      _
    // Predicated region
    $region30: #{tpu_custom_call.1} parent=1 // pred_check
      _
    $region31: #{tpu_custom_call.1} parent=1 // pred_check_branch
      %63 = sbr.rel (0) target = $region33
    $region32: #{tpu_custom_call.1} parent=1 // pred_region
      %64 = dma.done [#allocation6], 8192
    $region33: #{tpu_custom_call.1} parent=1 // pred_fallthru
      _
    %v66 = vld [vmem:[%s2] sm:$0x1]
    %v67 = vld [vmem:[%s4] sm:$0xff]
    %v68 = vld [vmem:[#allocation2] sm:$0xff]
    %v69 = vld [vmem:[#allocation2 + $0x8] sm:$0xff]
    %v70 = vld [vmem:[#allocation2 + $0x10] sm:$0xff]
    %v71 = vld [vmem:[#allocation2 + $0x18] sm:$0xff]
    %v72 = vld [vmem:[#allocation2 + $0x20] sm:$0xff]
    %v73 = vld [vmem:[#allocation2 + $0x28] sm:$0xff]
    %v74 = vld [vmem:[#allocation2 + $0x30] sm:$0xff]
    %v75 = vld [vmem:[#allocation2 + $0x38] sm:$0xff]
    %v76 = vld [vmem:[#allocation2 + $0x40] sm:$0xff]
    %v77 = vld [vmem:[#allocation2 + $0x48] sm:$0xff]
    %v78 = vld [vmem:[#allocation2 + $0x50] sm:$0xff]
    %v79 = vld [vmem:[#allocation2 + $0x58] sm:$0xff]
    %v80 = vld [vmem:[#allocation2 + $0x60] sm:$0xff]
    %v81 = vld [vmem:[#allocation2 + $0x68] sm:$0xff]
    %v82 = vld [vmem:[#allocation2 + $0x70] sm:$0xff]
    %v83 = vld [vmem:[#allocation2 + $0x78] sm:$0xff]
    %v84 = vld [vmem:[#allocation2 + $0x80] sm:$0xff]
    %v85 = vld [vmem:[#allocation2 + $0x88] sm:$0xff]
    %v86 = vld [vmem:[#allocation2 + $0x90] sm:$0xff]
    %v87 = vld [vmem:[#allocation2 + $0x98] sm:$0xff]
    %v88 = vld [vmem:[#allocation2 + $0xa0] sm:$0xff]
    %v89 = vld [vmem:[#allocation2 + $0xa8] sm:$0xff]
    %v90 = vld [vmem:[#allocation2 + $0xb0] sm:$0xff]
    %v91 = vld [vmem:[#allocation2 + $0xb8] sm:$0xff]
    %v92 = vld [vmem:[#allocation2 + $0xc0] sm:$0xff]
    %v93 = vld [vmem:[#allocation2 + $0xc8] sm:$0xff]
    %v94 = vld [vmem:[#allocation2 + $0xd0] sm:$0xff]
    %v95 = vld [vmem:[#allocation2 + $0xd8] sm:$0xff]
    %v96 = vld [vmem:[#allocation2 + $0xe0] sm:$0xff]
    %v97 = vld [vmem:[#allocation2 + $0xe8] sm:$0xff]
    %v98 = vld [vmem:[#allocation2 + $0xf0] sm:$0xff]
    %v99 = vld [vmem:[#allocation2 + $0xf8] sm:$0xff]
    %v100 = vld [vmem:[#allocation2 + $0x100] sm:$0xff]
    %v101 = vld [vmem:[#allocation2 + $0x108] sm:$0xff]
    %v102 = vld [vmem:[#allocation2 + $0x110] sm:$0xff]
    %v103 = vld [vmem:[#allocation2 + $0x118] sm:$0xff]
    %v104 = vld [vmem:[#allocation2 + $0x120] sm:$0xff]
    %v105 = vld [vmem:[#allocation2 + $0x128] sm:$0xff]
    %v106 = vld [vmem:[#allocation2 + $0x130] sm:$0xff]
    %v107 = vld [vmem:[#allocation2 + $0x138] sm:$0xff]
    %v108 = vld [vmem:[#allocation2 + $0x140] sm:$0xff]
    %v109 = vld [vmem:[#allocation2 + $0x148] sm:$0xff]
    %v110 = vld [vmem:[#allocation2 + $0x150] sm:$0xff]
    %v111 = vld [vmem:[#allocation2 + $0x158] sm:$0xff]
    %v112 = vld [vmem:[#allocation2 + $0x160] sm:$0xff]
    %v113 = vld [vmem:[#allocation2 + $0x168] sm:$0xff]
    %v114 = vld [vmem:[#allocation2 + $0x170] sm:$0xff]
    %v115 = vld [vmem:[#allocation2 + $0x178] sm:$0xff]
    %v116 = vld [vmem:[#allocation2 + $0x180] sm:$0xff]
    %v117 = vld [vmem:[#allocation2 + $0x188] sm:$0xff]
    %v118 = vld [vmem:[#allocation2 + $0x190] sm:$0xff]
    %v119 = vld [vmem:[#allocation2 + $0x198] sm:$0xff]
    %v120 = vld [vmem:[#allocation2 + $0x1a0] sm:$0xff]
    %v121 = vld [vmem:[#allocation2 + $0x1a8] sm:$0xff]
    %v122 = vld [vmem:[#allocation2 + $0x1b0] sm:$0xff]
    %v123 = vld [vmem:[#allocation2 + $0x1b8] sm:$0xff]
    %v124 = vld [vmem:[#allocation2 + $0x1c0] sm:$0xff]
    %v125 = vld [vmem:[#allocation2 + $0x1c8] sm:$0xff]
    %v126 = vld [vmem:[#allocation2 + $0x1d0] sm:$0xff]
    %v127 = vld [vmem:[#allocation2 + $0x1d8] sm:$0xff]
    %v128 = vld [vmem:[#allocation2 + $0x1e0] sm:$0xff]
    %v129 = vld [vmem:[#allocation2 + $0x1e8] sm:$0xff]
    %v130 = vld [vmem:[#allocation2 + $0x1f0] sm:$0xff]
    %v131 = vld [vmem:[#allocation2 + $0x1f8] sm:$0xff]
    %v132 = vld [vmem:[#allocation5] sm:$0xf]
    %v133 = vld [vmem:[#allocation5 + $0x4] sm:$0xf]
    %v134 = vld [vmem:[#allocation5 + $0x8] sm:$0xf]
    %v135 = vld [vmem:[#allocation5 + $0xc] sm:$0xf]
    %v136 = vld [vmem:[#allocation5 + $0x10] sm:$0xf]
    %v137 = vld [vmem:[#allocation5 + $0x14] sm:$0xf]
    %v138 = vld [vmem:[#allocation5 + $0x18] sm:$0xf]
    %v139 = vld [vmem:[#allocation5 + $0x1c] sm:$0xf]
    %v140 = vld [vmem:[#allocation5 + $0x20] sm:$0xf]
    %v141 = vld [vmem:[#allocation5 + $0x24] sm:$0xf]
    %v142 = vld [vmem:[#allocation5 + $0x28] sm:$0xf]
    %v143 = vld [vmem:[#allocation5 + $0x2c] sm:$0xf]
    %v144 = vld [vmem:[#allocation5 + $0x30] sm:$0xf]
    %v145 = vld [vmem:[#allocation5 + $0x34] sm:$0xf]
    %v146 = vld [vmem:[#allocation5 + $0x38] sm:$0xf]
    %v147 = vld [vmem:[#allocation5 + $0x3c] sm:$0xf]
    %v148 = vld [vmem:[#allocation5 + $0x40] sm:$0xf]
    %v149 = vld [vmem:[#allocation5 + $0x44] sm:$0xf]
    %v150 = vld [vmem:[#allocation5 + $0x48] sm:$0xf]
    %v151 = vld [vmem:[#allocation5 + $0x4c] sm:$0xf]
    %v152 = vld [vmem:[#allocation5 + $0x50] sm:$0xf]
    %v153 = vld [vmem:[#allocation5 + $0x54] sm:$0xf]
    %v154 = vld [vmem:[#allocation5 + $0x58] sm:$0xf]
    %v155 = vld [vmem:[#allocation5 + $0x5c] sm:$0xf]
    %v156 = vld [vmem:[#allocation5 + $0x60] sm:$0xf]
    %v157 = vld [vmem:[#allocation5 + $0x64] sm:$0xf]
    %v158 = vld [vmem:[#allocation5 + $0x68] sm:$0xf]
    %v159 = vld [vmem:[#allocation5 + $0x6c] sm:$0xf]
    %v160 = vld [vmem:[#allocation5 + $0x70] sm:$0xf]
    %v161 = vld [vmem:[#allocation5 + $0x74] sm:$0xf]
    %v162 = vld [vmem:[#allocation5 + $0x78] sm:$0xf]
    %v163 = vld [vmem:[#allocation5 + $0x7c] sm:$0xf]
    %v164 = vld [vmem:[#allocation5 + $0x80] sm:$0xf]
    %v165 = vld [vmem:[#allocation5 + $0x84] sm:$0xf]
    %v166 = vld [vmem:[#allocation5 + $0x88] sm:$0xf]
    %v167 = vld [vmem:[#allocation5 + $0x8c] sm:$0xf]
    %v168 = vld [vmem:[#allocation5 + $0x90] sm:$0xf]
    %v169 = vld [vmem:[#allocation5 + $0x94] sm:$0xf]
    %v170 = vld [vmem:[#allocation5 + $0x98] sm:$0xf]
    %v171 = vld [vmem:[#allocation5 + $0x9c] sm:$0xf]
    %v172 = vld [vmem:[#allocation5 + $0xa0] sm:$0xf]
    %v173 = vld [vmem:[#allocation5 + $0xa4] sm:$0xf]
    %v174 = vld [vmem:[#allocation5 + $0xa8] sm:$0xf]
    %v175 = vld [vmem:[#allocation5 + $0xac] sm:$0xf]
    %v176 = vld [vmem:[#allocation5 + $0xb0] sm:$0xf]
    %v177 = vld [vmem:[#allocation5 + $0xb4] sm:$0xf]
    %v178 = vld [vmem:[#allocation5 + $0xb8] sm:$0xf]
    %v179 = vld [vmem:[#allocation5 + $0xbc] sm:$0xf]
    %v180 = vld [vmem:[#allocation5 + $0xc0] sm:$0xf]
    %v181 = vld [vmem:[#allocation5 + $0xc4] sm:$0xf]
    %v182 = vld [vmem:[#allocation5 + $0xc8] sm:$0xf]
    %v183 = vld [vmem:[#allocation5 + $0xcc] sm:$0xf]
    %v184 = vld [vmem:[#allocation5 + $0xd0] sm:$0xf]
    %v185 = vld [vmem:[#allocation5 + $0xd4] sm:$0xf]
    %v186 = vld [vmem:[#allocation5 + $0xd8] sm:$0xf]
    %v187 = vld [vmem:[#allocation5 + $0xdc] sm:$0xf]
    %v188 = vld [vmem:[#allocation5 + $0xe0] sm:$0xf]
    %v189 = vld [vmem:[#allocation5 + $0xe4] sm:$0xf]
    %v190 = vld [vmem:[#allocation5 + $0xe8] sm:$0xf]
    %v191 = vld [vmem:[#allocation5 + $0xec] sm:$0xf]
    %v192 = vld [vmem:[#allocation5 + $0xf0] sm:$0xf]
    %v193 = vld [vmem:[#allocation5 + $0xf4] sm:$0xf]
    %v194 = vld [vmem:[#allocation5 + $0xf8] sm:$0xf]
    %v195 = vld [vmem:[#allocation5 + $0xfc] sm:$0xf]
    %v196 = vld [vmem:[#allocation5 + $0x100] sm:$0xf]
    %v197 = vld [vmem:[#allocation5 + $0x104] sm:$0xf]
    %v198 = vld [vmem:[#allocation5 + $0x108] sm:$0xf]
    %v199 = vld [vmem:[#allocation5 + $0x10c] sm:$0xf]
    %v200 = vld [vmem:[#allocation5 + $0x110] sm:$0xf]
    %v201 = vld [vmem:[#allocation5 + $0x114] sm:$0xf]
    %v202 = vld [vmem:[#allocation5 + $0x118] sm:$0xf]
    %v203 = vld [vmem:[#allocation5 + $0x11c] sm:$0xf]
    %v204 = vld [vmem:[#allocation5 + $0x120] sm:$0xf]
    %v205 = vld [vmem:[#allocation5 + $0x124] sm:$0xf]
    %v206 = vld [vmem:[#allocation5 + $0x128] sm:$0xf]
    %v207 = vld [vmem:[#allocation5 + $0x12c] sm:$0xf]
    %v208 = vld [vmem:[#allocation5 + $0x130] sm:$0xf]
    %v209 = vld [vmem:[#allocation5 + $0x134] sm:$0xf]
    %v210 = vld [vmem:[#allocation5 + $0x138] sm:$0xf]
    %v211 = vld [vmem:[#allocation5 + $0x13c] sm:$0xf]
    %v212 = vld [vmem:[#allocation5 + $0x140] sm:$0xf]
    %v213 = vld [vmem:[#allocation5 + $0x144] sm:$0xf]
    %v214 = vld [vmem:[#allocation5 + $0x148] sm:$0xf]
    %v215 = vld [vmem:[#allocation5 + $0x14c] sm:$0xf]
    %v216 = vld [vmem:[#allocation5 + $0x150] sm:$0xf]
    %v217 = vld [vmem:[#allocation5 + $0x154] sm:$0xf]
    %v218 = vld [vmem:[#allocation5 + $0x158] sm:$0xf]
    %v219 = vld [vmem:[#allocation5 + $0x15c] sm:$0xf]
    %v220 = vld [vmem:[#allocation5 + $0x160] sm:$0xf]
    %v221 = vld [vmem:[#allocation5 + $0x164] sm:$0xf]
    %v222 = vld [vmem:[#allocation5 + $0x168] sm:$0xf]
    %v223 = vld [vmem:[#allocation5 + $0x16c] sm:$0xf]
    %v224 = vld [vmem:[#allocation5 + $0x170] sm:$0xf]
    %v225 = vld [vmem:[#allocation5 + $0x174] sm:$0xf]
    %v226 = vld [vmem:[#allocation5 + $0x178] sm:$0xf]
    %v227 = vld [vmem:[#allocation5 + $0x17c] sm:$0xf]
    %v228 = vld [vmem:[#allocation5 + $0x180] sm:$0xf]
    %v229 = vld [vmem:[#allocation5 + $0x184] sm:$0xf]
    %v230 = vld [vmem:[#allocation5 + $0x188] sm:$0xf]
    %v231 = vld [vmem:[#allocation5 + $0x18c] sm:$0xf]
    %v232 = vld [vmem:[#allocation5 + $0x190] sm:$0xf]
    %v233 = vld [vmem:[#allocation5 + $0x194] sm:$0xf]
    %v234 = vld [vmem:[#allocation5 + $0x198] sm:$0xf]
    %v235 = vld [vmem:[#allocation5 + $0x19c] sm:$0xf]
    %v236 = vld [vmem:[#allocation5 + $0x1a0] sm:$0xf]
    %v237 = vld [vmem:[#allocation5 + $0x1a4] sm:$0xf]
    %v238 = vld [vmem:[#allocation5 + $0x1a8] sm:$0xf]
    %v239 = vld [vmem:[#allocation5 + $0x1ac] sm:$0xf]
    %v240 = vld [vmem:[#allocation5 + $0x1b0] sm:$0xf]
    %v241 = vld [vmem:[#allocation5 + $0x1b4] sm:$0xf]
    %v242 = vld [vmem:[#allocation5 + $0x1b8] sm:$0xf]
    %v243 = vld [vmem:[#allocation5 + $0x1bc] sm:$0xf]
    %v244 = vld [vmem:[#allocation5 + $0x1c0] sm:$0xf]
    %v245 = vld [vmem:[#allocation5 + $0x1c4] sm:$0xf]
    %v246 = vld [vmem:[#allocation5 + $0x1c8] sm:$0xf]
    %v247 = vld [vmem:[#allocation5 + $0x1cc] sm:$0xf]
    %v248 = vld [vmem:[#allocation5 + $0x1d0] sm:$0xf]
    %v249 = vld [vmem:[#allocation5 + $0x1d4] sm:$0xf]
    %v250 = vld [vmem:[#allocation5 + $0x1d8] sm:$0xf]
    %v251 = vld [vmem:[#allocation5 + $0x1dc] sm:$0xf]
    %v252 = vld [vmem:[#allocation5 + $0x1e0] sm:$0xf]
    %v253 = vld [vmem:[#allocation5 + $0x1e4] sm:$0xf]
    %v254 = vld [vmem:[#allocation5 + $0x1e8] sm:$0xf]
    %v255 = vld [vmem:[#allocation5 + $0x1ec] sm:$0xf]
    %v256 = vld [vmem:[#allocation5 + $0x1f0] sm:$0xf]
    %v257 = vld [vmem:[#allocation5 + $0x1f4] sm:$0xf]
    %v258 = vld [vmem:[#allocation5 + $0x1f8] sm:$0xf]
    %v259 = vld [vmem:[#allocation5 + $0x1fc] sm:$0xf]
    %v261 = vlaneseq
    %v262 = vshrl.u32 %v261, 7
    %v263 = vsub.s32 0, %v262
    %v264 = vrot.slane %v66, %v263
    %v330 = vunpack.c.l.b16 %v68
    %v331 = vunpack.c.h.b16 %v68
    %v332 = vunpack.c.l.b16 %v69
    %v333 = vunpack.c.h.b16 %v69
    %v334 = vunpack.c.l.b16 %v70
    %v335 = vunpack.c.h.b16 %v70
    %v336 = vunpack.c.l.b16 %v71
    %v337 = vunpack.c.h.b16 %v71
    %v338 = vunpack.c.l.b16 %v72
    %v339 = vunpack.c.h.b16 %v72
    %v340 = vunpack.c.l.b16 %v73
    %v341 = vunpack.c.h.b16 %v73
    %v342 = vunpack.c.l.b16 %v74
    %v343 = vunpack.c.h.b16 %v74
    %v344 = vunpack.c.l.b16 %v75
    %v345 = vunpack.c.h.b16 %v75
    %v346 = vunpack.c.l.b16 %v76
    %v347 = vunpack.c.h.b16 %v76
    %v348 = vunpack.c.l.b16 %v77
    %v349 = vunpack.c.h.b16 %v77
    %v350 = vunpack.c.l.b16 %v78
    %v351 = vunpack.c.h.b16 %v78
    %v352 = vunpack.c.l.b16 %v79
    %v353 = vunpack.c.h.b16 %v79
    %v354 = vunpack.c.l.b16 %v80
    %v355 = vunpack.c.h.b16 %v80
    %v356 = vunpack.c.l.b16 %v81
    %v357 = vunpack.c.h.b16 %v81
    %v358 = vunpack.c.l.b16 %v82
    %v359 = vunpack.c.h.b16 %v82
    %v360 = vunpack.c.l.b16 %v83
    %v361 = vunpack.c.h.b16 %v83
    %v362 = vunpack.c.l.b16 %v84
    %v363 = vunpack.c.h.b16 %v84
    %v364 = vunpack.c.l.b16 %v85
    %v365 = vunpack.c.h.b16 %v85
    %v366 = vunpack.c.l.b16 %v86
    %v367 = vunpack.c.h.b16 %v86
    %v368 = vunpack.c.l.b16 %v87
    %v369 = vunpack.c.h.b16 %v87
    %v370 = vunpack.c.l.b16 %v88
    %v371 = vunpack.c.h.b16 %v88
    %v372 = vunpack.c.l.b16 %v89
    %v373 = vunpack.c.h.b16 %v89
    %v374 = vunpack.c.l.b16 %v90
    %v375 = vunpack.c.h.b16 %v90
    %v376 = vunpack.c.l.b16 %v91
    %v377 = vunpack.c.h.b16 %v91
    %v378 = vunpack.c.l.b16 %v92
    %v379 = vunpack.c.h.b16 %v92
    %v380 = vunpack.c.l.b16 %v93
    %v381 = vunpack.c.h.b16 %v93
    %v382 = vunpack.c.l.b16 %v94
    %v383 = vunpack.c.h.b16 %v94
    %v384 = vunpack.c.l.b16 %v95
    %v385 = vunpack.c.h.b16 %v95
    %v386 = vunpack.c.l.b16 %v96
    %v387 = vunpack.c.h.b16 %v96
    %v388 = vunpack.c.l.b16 %v97
    %v389 = vunpack.c.h.b16 %v97
    %v390 = vunpack.c.l.b16 %v98
    %v391 = vunpack.c.h.b16 %v98
    %v392 = vunpack.c.l.b16 %v99
    %v393 = vunpack.c.h.b16 %v99
    %v394 = vunpack.c.l.b16 %v100
    %v395 = vunpack.c.h.b16 %v100
    %v396 = vunpack.c.l.b16 %v101
    %v397 = vunpack.c.h.b16 %v101
    %v398 = vunpack.c.l.b16 %v102
    %v399 = vunpack.c.h.b16 %v102
    %v400 = vunpack.c.l.b16 %v103
    %v401 = vunpack.c.h.b16 %v103
    %v402 = vunpack.c.l.b16 %v104
    %v403 = vunpack.c.h.b16 %v104
    %v404 = vunpack.c.l.b16 %v105
    %v405 = vunpack.c.h.b16 %v105
    %v406 = vunpack.c.l.b16 %v106
    %v407 = vunpack.c.h.b16 %v106
    %v408 = vunpack.c.l.b16 %v107
    %v409 = vunpack.c.h.b16 %v107
    %v410 = vunpack.c.l.b16 %v108
    %v411 = vunpack.c.h.b16 %v108
    %v412 = vunpack.c.l.b16 %v109
    %v413 = vunpack.c.h.b16 %v109
    %v414 = vunpack.c.l.b16 %v110
    %v415 = vunpack.c.h.b16 %v110
    %v416 = vunpack.c.l.b16 %v111
    %v417 = vunpack.c.h.b16 %v111
    %v418 = vunpack.c.l.b16 %v112
    %v419 = vunpack.c.h.b16 %v112
    %v420 = vunpack.c.l.b16 %v113
    %v421 = vunpack.c.h.b16 %v113
    %v422 = vunpack.c.l.b16 %v114
    %v423 = vunpack.c.h.b16 %v114
    %v424 = vunpack.c.l.b16 %v115
    %v425 = vunpack.c.h.b16 %v115
    %v426 = vunpack.c.l.b16 %v116
    %v427 = vunpack.c.h.b16 %v116
    %v428 = vunpack.c.l.b16 %v117
    %v429 = vunpack.c.h.b16 %v117
    %v430 = vunpack.c.l.b16 %v118
    %v431 = vunpack.c.h.b16 %v118
    %v432 = vunpack.c.l.b16 %v119
    %v433 = vunpack.c.h.b16 %v119
    %v434 = vunpack.c.l.b16 %v120
    %v435 = vunpack.c.h.b16 %v120
    %v436 = vunpack.c.l.b16 %v121
    %v437 = vunpack.c.h.b16 %v121
    %v438 = vunpack.c.l.b16 %v122
    %v439 = vunpack.c.h.b16 %v122
    %v440 = vunpack.c.l.b16 %v123
    %v441 = vunpack.c.h.b16 %v123
    %v442 = vunpack.c.l.b16 %v124
    %v443 = vunpack.c.h.b16 %v124
    %v444 = vunpack.c.l.b16 %v125
    %v445 = vunpack.c.h.b16 %v125
    %v446 = vunpack.c.l.b16 %v126
    %v447 = vunpack.c.h.b16 %v126
    %v448 = vunpack.c.l.b16 %v127
    %v449 = vunpack.c.h.b16 %v127
    %v450 = vunpack.c.l.b16 %v128
    %v451 = vunpack.c.h.b16 %v128
    %v452 = vunpack.c.l.b16 %v129
    %v453 = vunpack.c.h.b16 %v129
    %v454 = vunpack.c.l.b16 %v130
    %v455 = vunpack.c.h.b16 %v130
    %v456 = vunpack.c.l.b16 %v131
    %v457 = vunpack.c.h.b16 %v131
    %v458 = vpack.c.b16 %v338, %v330
    %v459 = vpack.c.b16 %v339, %v331
    %v460 = vpack.c.b16 %v340, %v332
    %v461 = vpack.c.b16 %v341, %v333
    %v462 = vpack.c.b16 %v342, %v334
    %v463 = vpack.c.b16 %v343, %v335
    %v464 = vpack.c.b16 %v344, %v336
    %v465 = vpack.c.b16 %v345, %v337
    %v466 = vpack.c.b16 %v354, %v346
    %v467 = vpack.c.b16 %v355, %v347
    %v468 = vpack.c.b16 %v356, %v348
    %v469 = vpack.c.b16 %v357, %v349
    %v470 = vpack.c.b16 %v358, %v350
    %v471 = vpack.c.b16 %v359, %v351
    %v472 = vpack.c.b16 %v360, %v352
    %v473 = vpack.c.b16 %v361, %v353
    %v474 = vpack.c.b16 %v370, %v362
    %v475 = vpack.c.b16 %v371, %v363
    %v476 = vpack.c.b16 %v372, %v364
    %v477 = vpack.c.b16 %v373, %v365
    %v478 = vpack.c.b16 %v374, %v366
    %v479 = vpack.c.b16 %v375, %v367
    %v480 = vpack.c.b16 %v376, %v368
    %v481 = vpack.c.b16 %v377, %v369
    %v482 = vpack.c.b16 %v386, %v378
    %v483 = vpack.c.b16 %v387, %v379
    %v484 = vpack.c.b16 %v388, %v380
    %v485 = vpack.c.b16 %v389, %v381
    %v486 = vpack.c.b16 %v390, %v382
    %v487 = vpack.c.b16 %v391, %v383
    %v488 = vpack.c.b16 %v392, %v384
    %v489 = vpack.c.b16 %v393, %v385
    %v490 = vpack.c.b16 %v402, %v394
    %v491 = vpack.c.b16 %v403, %v395
    %v492 = vpack.c.b16 %v404, %v396
    %v493 = vpack.c.b16 %v405, %v397
    %v494 = vpack.c.b16 %v406, %v398
    %v495 = vpack.c.b16 %v407, %v399
    %v496 = vpack.c.b16 %v408, %v400
    %v497 = vpack.c.b16 %v409, %v401
    %v498 = vpack.c.b16 %v418, %v410
    %v499 = vpack.c.b16 %v419, %v411
    %v500 = vpack.c.b16 %v420, %v412
    %v501 = vpack.c.b16 %v421, %v413
    %v502 = vpack.c.b16 %v422, %v414
    %v503 = vpack.c.b16 %v423, %v415
    %v504 = vpack.c.b16 %v424, %v416
    %v505 = vpack.c.b16 %v425, %v417
    %v506 = vpack.c.b16 %v434, %v426
    %v507 = vpack.c.b16 %v435, %v427
    %v508 = vpack.c.b16 %v436, %v428
    %v509 = vpack.c.b16 %v437, %v429
    %v510 = vpack.c.b16 %v438, %v430
    %v511 = vpack.c.b16 %v439, %v431
    %v512 = vpack.c.b16 %v440, %v432
    %v513 = vpack.c.b16 %v441, %v433
    %v514 = vpack.c.b16 %v450, %v442
    %v515 = vpack.c.b16 %v451, %v443
    %v516 = vpack.c.b16 %v452, %v444
    %v517 = vpack.c.b16 %v453, %v445
    %v518 = vpack.c.b16 %v454, %v446
    %v519 = vpack.c.b16 %v455, %v447
    %v520 = vpack.c.b16 %v456, %v448
    %v521 = vpack.c.b16 %v457, %v449
    %v714 = vunpack.c.l.b16 %v132
    %v715 = vunpack.c.l.b16 %v133
    %v716 = vunpack.c.l.b16 %v134
    %v717 = vunpack.c.l.b16 %v135
    %v718 = vunpack.c.l.b16 %v136
    %v719 = vunpack.c.l.b16 %v137
    %v720 = vunpack.c.l.b16 %v138
    %v721 = vunpack.c.l.b16 %v139
    %v722 = vunpack.c.l.b16 %v140
    %v723 = vunpack.c.l.b16 %v141
    %v724 = vunpack.c.l.b16 %v142
    %v725 = vunpack.c.l.b16 %v143
    %v726 = vunpack.c.l.b16 %v144
    %v727 = vunpack.c.l.b16 %v145
    %v728 = vunpack.c.l.b16 %v146
    %v729 = vunpack.c.l.b16 %v147
    %v730 = vunpack.c.l.b16 %v148
    %v731 = vunpack.c.l.b16 %v149
    %v732 = vunpack.c.l.b16 %v150
    %v733 = vunpack.c.l.b16 %v151
    %v734 = vunpack.c.l.b16 %v152
    %v735 = vunpack.c.l.b16 %v153
    %v736 = vunpack.c.l.b16 %v154
    %v737 = vunpack.c.l.b16 %v155
    %v738 = vunpack.c.l.b16 %v156
    %v739 = vunpack.c.l.b16 %v157
    %v740 = vunpack.c.l.b16 %v158
    %v741 = vunpack.c.l.b16 %v159
    %v742 = vunpack.c.l.b16 %v160
    %v743 = vunpack.c.l.b16 %v161
    %v744 = vunpack.c.l.b16 %v162
    %v745 = vunpack.c.l.b16 %v163
    %v746 = vunpack.c.l.b16 %v164
    %v747 = vunpack.c.l.b16 %v165
    %v748 = vunpack.c.l.b16 %v166
    %v749 = vunpack.c.l.b16 %v167
    %v750 = vunpack.c.l.b16 %v168
    %v751 = vunpack.c.l.b16 %v169
    %v752 = vunpack.c.l.b16 %v170
    %v753 = vunpack.c.l.b16 %v171
    %v754 = vunpack.c.l.b16 %v172
    %v755 = vunpack.c.l.b16 %v173
    %v756 = vunpack.c.l.b16 %v174
    %v757 = vunpack.c.l.b16 %v175
    %v758 = vunpack.c.l.b16 %v176
    %v759 = vunpack.c.l.b16 %v177
    %v760 = vunpack.c.l.b16 %v178
    %v761 = vunpack.c.l.b16 %v179
    %v762 = vunpack.c.l.b16 %v180
    %v763 = vunpack.c.l.b16 %v181
    %v764 = vunpack.c.l.b16 %v182
    %v765 = vunpack.c.l.b16 %v183
    %v766 = vunpack.c.l.b16 %v184
    %v767 = vunpack.c.l.b16 %v185
    %v768 = vunpack.c.l.b16 %v186
    %v769 = vunpack.c.l.b16 %v187
    %v770 = vunpack.c.l.b16 %v188
    %v771 = vunpack.c.l.b16 %v189
    %v772 = vunpack.c.l.b16 %v190
    %v773 = vunpack.c.l.b16 %v191
    %v774 = vunpack.c.l.b16 %v192
    %v775 = vunpack.c.l.b16 %v193
    %v776 = vunpack.c.l.b16 %v194
    %v777 = vunpack.c.l.b16 %v195
    %v778 = vunpack.c.l.b16 %v196
    %v779 = vunpack.c.l.b16 %v197
    %v780 = vunpack.c.l.b16 %v198
    %v781 = vunpack.c.l.b16 %v199
    %v782 = vunpack.c.l.b16 %v200
    %v783 = vunpack.c.l.b16 %v201
    %v784 = vunpack.c.l.b16 %v202
    %v785 = vunpack.c.l.b16 %v203
    %v786 = vunpack.c.l.b16 %v204
    %v787 = vunpack.c.l.b16 %v205
    %v788 = vunpack.c.l.b16 %v206
    %v789 = vunpack.c.l.b16 %v207
    %v790 = vunpack.c.l.b16 %v208
    %v791 = vunpack.c.l.b16 %v209
    %v792 = vunpack.c.l.b16 %v210
    %v793 = vunpack.c.l.b16 %v211
    %v794 = vunpack.c.l.b16 %v212
    %v795 = vunpack.c.l.b16 %v213
    %v796 = vunpack.c.l.b16 %v214
    %v797 = vunpack.c.l.b16 %v215
    %v798 = vunpack.c.l.b16 %v216
    %v799 = vunpack.c.l.b16 %v217
    %v800 = vunpack.c.l.b16 %v218
    %v801 = vunpack.c.l.b16 %v219
    %v802 = vunpack.c.l.b16 %v220
    %v803 = vunpack.c.l.b16 %v221
    %v804 = vunpack.c.l.b16 %v222
    %v805 = vunpack.c.l.b16 %v223
    %v806 = vunpack.c.l.b16 %v224
    %v807 = vunpack.c.l.b16 %v225
    %v808 = vunpack.c.l.b16 %v226
    %v809 = vunpack.c.l.b16 %v227
    %v810 = vunpack.c.l.b16 %v228
    %v811 = vunpack.c.l.b16 %v229
    %v812 = vunpack.c.l.b16 %v230
    %v813 = vunpack.c.l.b16 %v231
    %v814 = vunpack.c.l.b16 %v232
    %v815 = vunpack.c.l.b16 %v233
    %v816 = vunpack.c.l.b16 %v234
    %v817 = vunpack.c.l.b16 %v235
    %v818 = vunpack.c.l.b16 %v236
    %v819 = vunpack.c.l.b16 %v237
    %v820 = vunpack.c.l.b16 %v238
    %v821 = vunpack.c.l.b16 %v239
    %v822 = vunpack.c.l.b16 %v240
    %v823 = vunpack.c.l.b16 %v241
    %v824 = vunpack.c.l.b16 %v242
    %v825 = vunpack.c.l.b16 %v243
    %v826 = vunpack.c.l.b16 %v244
    %v827 = vunpack.c.l.b16 %v245
    %v828 = vunpack.c.l.b16 %v246
    %v829 = vunpack.c.l.b16 %v247
    %v830 = vunpack.c.l.b16 %v248
    %v831 = vunpack.c.l.b16 %v249
    %v832 = vunpack.c.l.b16 %v250
    %v833 = vunpack.c.l.b16 %v251
    %v834 = vunpack.c.l.b16 %v252
    %v835 = vunpack.c.l.b16 %v253
    %v836 = vunpack.c.l.b16 %v254
    %v837 = vunpack.c.l.b16 %v255
    %v838 = vunpack.c.l.b16 %v256
    %v839 = vunpack.c.l.b16 %v257
    %v840 = vunpack.c.l.b16 %v258
    %v841 = vunpack.c.l.b16 %v259
    %v842 = vpack.c.b16 %v715, %v714
    %v843 = vpack.c.b16 %v717, %v716
    %v844 = vpack.c.b16 %v719, %v718
    %v845 = vpack.c.b16 %v721, %v720
    %v846 = vpack.c.b16 %v723, %v722
    %v847 = vpack.c.b16 %v725, %v724
    %v848 = vpack.c.b16 %v727, %v726
    %v849 = vpack.c.b16 %v729, %v728
    %v850 = vpack.c.b16 %v731, %v730
    %v851 = vpack.c.b16 %v733, %v732
    %v852 = vpack.c.b16 %v735, %v734
    %v853 = vpack.c.b16 %v737, %v736
    %v854 = vpack.c.b16 %v739, %v738
    %v855 = vpack.c.b16 %v741, %v740
    %v856 = vpack.c.b16 %v743, %v742
    %v857 = vpack.c.b16 %v745, %v744
    %v858 = vpack.c.b16 %v747, %v746
    %v859 = vpack.c.b16 %v749, %v748
    %v860 = vpack.c.b16 %v751, %v750
    %v861 = vpack.c.b16 %v753, %v752
    %v862 = vpack.c.b16 %v755, %v754
    %v863 = vpack.c.b16 %v757, %v756
    %v864 = vpack.c.b16 %v759, %v758
    %v865 = vpack.c.b16 %v761, %v760
    %v866 = vpack.c.b16 %v763, %v762
    %v867 = vpack.c.b16 %v765, %v764
    %v868 = vpack.c.b16 %v767, %v766
    %v869 = vpack.c.b16 %v769, %v768
    %v870 = vpack.c.b16 %v771, %v770
    %v871 = vpack.c.b16 %v773, %v772
    %v872 = vpack.c.b16 %v775, %v774
    %v873 = vpack.c.b16 %v777, %v776
    %v874 = vpack.c.b16 %v779, %v778
    %v875 = vpack.c.b16 %v781, %v780
    %v876 = vpack.c.b16 %v783, %v782
    %v877 = vpack.c.b16 %v785, %v784
    %v878 = vpack.c.b16 %v787, %v786
    %v879 = vpack.c.b16 %v789, %v788
    %v880 = vpack.c.b16 %v791, %v790
    %v881 = vpack.c.b16 %v793, %v792
    %v882 = vpack.c.b16 %v795, %v794
    %v883 = vpack.c.b16 %v797, %v796
    %v884 = vpack.c.b16 %v799, %v798
    %v885 = vpack.c.b16 %v801, %v800
    %v886 = vpack.c.b16 %v803, %v802
    %v887 = vpack.c.b16 %v805, %v804
    %v888 = vpack.c.b16 %v807, %v806
    %v889 = vpack.c.b16 %v809, %v808
    %v890 = vpack.c.b16 %v811, %v810
    %v891 = vpack.c.b16 %v813, %v812
    %v892 = vpack.c.b16 %v815, %v814
    %v893 = vpack.c.b16 %v817, %v816
    %v894 = vpack.c.b16 %v819, %v818
    %v895 = vpack.c.b16 %v821, %v820
    %v896 = vpack.c.b16 %v823, %v822
    %v897 = vpack.c.b16 %v825, %v824
    %v898 = vpack.c.b16 %v827, %v826
    %v899 = vpack.c.b16 %v829, %v828
    %v900 = vpack.c.b16 %v831, %v830
    %v901 = vpack.c.b16 %v833, %v832
    %v902 = vpack.c.b16 %v835, %v834
    %v903 = vpack.c.b16 %v837, %v836
    %v904 = vpack.c.b16 %v839, %v838
    %v905 = vpack.c.b16 %v841, %v840
    %970 = vmatprep.subr.bf16.mxu0 0
    %971 = vmatpush1.bf16.msra.mxu0 %v842
    %972 = vmatprep.subr.bf16.mxu0 0
    %973 = vmatpush1.bf16.msra.mxu0 %v843
    %974 = vmatprep.subr.bf16.mxu0 0
    %975 = vmatpush1.bf16.msra.mxu0 %v844
    %976 = vmatprep.subr.bf16.mxu0 0
    %977 = vmatpush1.bf16.msra.mxu0 %v845
    %978 = vmatprep.subr.bf16.mxu0 0
    %979 = vmatpush1.bf16.msra.mxu0 %v846
    %980 = vmatprep.subr.bf16.mxu0 0
    %981 = vmatpush1.bf16.msra.mxu0 %v847
    %982 = vmatprep.subr.bf16.mxu0 0
    %983 = vmatpush1.bf16.msra.mxu0 %v848
    %984 = vmatprep.subr.bf16.mxu0 0
    %985 = vmatpush1.bf16.msra.mxu0 %v849
    %986 = vmatprep.subr.bf16.mxu0 0
    %987 = vmatpush1.bf16.msra.mxu0 %v850
    %988 = vmatprep.subr.bf16.mxu0 0
    %989 = vmatpush1.bf16.msra.mxu0 %v851
    %990 = vmatprep.subr.bf16.mxu0 0
    %991 = vmatpush1.bf16.msra.mxu0 %v852
    %992 = vmatprep.subr.bf16.mxu0 0
    %993 = vmatpush1.bf16.msra.mxu0 %v853
    %994 = vmatprep.subr.bf16.mxu0 0
    %995 = vmatpush1.bf16.msra.mxu0 %v854
    %996 = vmatprep.subr.bf16.mxu0 0
    %997 = vmatpush1.bf16.msra.mxu0 %v855
    %998 = vmatprep.subr.bf16.mxu0 0
    %999 = vmatpush1.bf16.msra.mxu0 %v856
    %1000 = vmatprep.subr.bf16.mxu0 0
    %1001 = vmatpush1.bf16.msra.mxu0 %v857
    %1002 = vmatprep.mubr.bf16.mxu0 %v459
    %1003 = vmatmul.mubr.bf16.gmra.mrb[0].mxu0 %v458
    %v1004 = vpop.f32.mrb[0].mxu0
    %v1005 = vadd.f32 %v264, %v1004
    %v1006 = vpop.f32.mrb[0].mxu0
    %v1007 = vpop.f32.mrb[0].mxu0
    %v1008 = vadd.f32 %v264, %v1007
    %v1009 = vpop.f32.mrb[0].mxu0
    %1010 = vmatprep.mubr.bf16.mxu0 %v467
    %1011 = vmatmul.mubr.bf16.gmra.mrb[0].mxu0 %v466
    %v1012 = vpop.f32.mrb[0].mxu0
    %v1013 = vadd.f32 %v264, %v1012
    %v1014 = vpop.f32.mrb[0].mxu0
    %v1015 = vpop.f32.mrb[0].mxu0
    %v1016 = vadd.f32 %v264, %v1015
    %v1017 = vpop.f32.mrb[0].mxu0
    %1018 = vmatprep.mubr.bf16.mxu0 %v475
    %1019 = vmatmul.mubr.bf16.gmra.mrb[0].mxu0 %v474
    %v1020 = vpop.f32.mrb[0].mxu0
    %v1021 = vadd.f32 %v264, %v1020
    %v1022 = vpop.f32.mrb[0].mxu0
    %v1023 = vpop.f32.mrb[0].mxu0
    %v1024 = vadd.f32 %v264, %v1023
    %v1025 = vpop.f32.mrb[0].mxu0
    %1026 = vmatprep.mubr.bf16.mxu0 %v483
    %1027 = vmatmul.mubr.bf16.gmra.mrb[0].mxu0 %v482
    %v1028 = vpop.f32.mrb[0].mxu0
    %v1029 = vadd.f32 %v264, %v1028
    %v1030 = vpop.f32.mrb[0].mxu0
    %v1031 = vpop.f32.mrb[0].mxu0
    %v1032 = vadd.f32 %v264, %v1031
    %v1033 = vpop.f32.mrb[0].mxu0
    %1034 = vmatprep.mubr.bf16.mxu0 %v491
    %1035 = vmatmul.mubr.bf16.gmra.mrb[0].mxu0 %v490
    %v1036 = vpop.f32.mrb[0].mxu0
    %v1037 = vadd.f32 %v264, %v1036
    %v1038 = vpop.f32.mrb[0].mxu0
    %v1039 = vpop.f32.mrb[0].mxu0
    %v1040 = vadd.f32 %v264, %v1039
    %v1041 = vpop.f32.mrb[0].mxu0
    %1042 = vmatprep.mubr.bf16.mxu0 %v499
    %1043 = vmatmul.mubr.bf16.gmra.mrb[0].mxu0 %v498
    %v1044 = vpop.f32.mrb[0].mxu0
    %v1045 = vadd.f32 %v264, %v1044
    %v1046 = vpop.f32.mrb[0].mxu0
    %v1047 = vpop.f32.mrb[0].mxu0
    %v1048 = vadd.f32 %v264, %v1047
    %v1049 = vpop.f32.mrb[0].mxu0
    %1050 = vmatprep.mubr.bf16.mxu0 %v507
    %1051 = vmatmul.mubr.bf16.gmra.mrb[0].mxu0 %v506
    %v1052 = vpop.f32.mrb[0].mxu0
    %v1053 = vadd.f32 %v264, %v1052
    %v1054 = vpop.f32.mrb[0].mxu0
    %v1055 = vpop.f32.mrb[0].mxu0
    %v1056 = vadd.f32 %v264, %v1055
    %v1057 = vpop.f32.mrb[0].mxu0
    %1058 = vmatprep.mubr.bf16.mxu0 %v515
    %1059 = vmatmul.mubr.bf16.gmra.mrb[0].mxu0 %v514
    %v1060 = vpop.f32.mrb[0].mxu0
    %v1061 = vadd.f32 %v264, %v1060
    %v1062 = vpop.f32.mrb[0].mxu0
    %v1063 = vpop.f32.mrb[0].mxu0
    %v1064 = vadd.f32 %v264, %v1063
    %v1065 = vpop.f32.mrb[0].mxu0
    %1066 = vdwg.mxu0
    %1067 = vmatprep.subr.bf16.mxu0 0
    %1068 = vmatpush1.bf16.msra.mxu0 %v858
    %1069 = vmatprep.subr.bf16.mxu0 0
    %1070 = vmatpush1.bf16.msra.mxu0 %v859
    %1071 = vmatprep.subr.bf16.mxu0 0
    %1072 = vmatpush1.bf16.msra.mxu0 %v860
    %1073 = vmatprep.subr.bf16.mxu0 0
    %1074 = vmatpush1.bf16.msra.mxu0 %v861
    %1075 = vmatprep.subr.bf16.mxu0 0
    %1076 = vmatpush1.bf16.msra.mxu0 %v862
    %1077 = vmatprep.subr.bf16.mxu0 0
    %1078 = vmatpush1.bf16.msra.mxu0 %v863
    %1079 = vmatprep.subr.bf16.mxu0 0
    %1080 = vmatpush1.bf16.msra.mxu0 %v864
    %1081 = vmatprep.subr.bf16.mxu0 0
    %1082 = vmatpush1.bf16.msra.mxu0 %v865
    %1083 = vmatprep.subr.bf16.mxu0 0
    %1084 = vmatpush1.bf16.msra.mxu0 %v866
    %1085 = vmatprep.subr.bf16.mxu0 0
    %1086 = vmatpush1.bf16.msra.mxu0 %v867
    %1087 = vmatprep.subr.bf16.mxu0 0
    %1088 = vmatpush1.bf16.msra.mxu0 %v868
    %1089 = vmatprep.subr.bf16.mxu0 0
    %1090 = vmatpush1.bf16.msra.mxu0 %v869
    %1091 = vmatprep.subr.bf16.mxu0 0
    %1092 = vmatpush1.bf16.msra.mxu0 %v870
    %1093 = vmatprep.subr.bf16.mxu0 0
    %1094 = vmatpush1.bf16.msra.mxu0 %v871
    %1095 = vmatprep.subr.bf16.mxu0 0
    %1096 = vmatpush1.bf16.msra.mxu0 %v872
    %1097 = vmatprep.subr.bf16.mxu0 0
    %1098 = vmatpush1.bf16.msra.mxu0 %v873
    %1099 = vmatprep.mubr.bf16.mxu0 %v461
    %1100 = vmatmul.mubr.bf16.gmra.mrb[0].mxu0 %v460
    %v1101 = vpop.f32.mrb[0].mxu0
    %v1102 = vadd.f32 %v1005, %v1101
    %v1103 = vpop.f32.mrb[0].mxu0
    %v1104 = vpop.f32.mrb[0].mxu0
    %v1105 = vadd.f32 %v1008, %v1104
    %v1106 = vpop.f32.mrb[0].mxu0
    %1107 = vmatprep.mubr.bf16.mxu0 %v469
    %1108 = vmatmul.mubr.bf16.gmra.mrb[0].mxu0 %v468
    %v1109 = vpop.f32.mrb[0].mxu0
    %v1110 = vadd.f32 %v1013, %v1109
    %v1111 = vpop.f32.mrb[0].mxu0
    %v1112 = vpop.f32.mrb[0].mxu0
    %v1113 = vadd.f32 %v1016, %v1112
    %v1114 = vpop.f32.mrb[0].mxu0
    %1115 = vmatprep.mubr.bf16.mxu0 %v477
    %1116 = vmatmul.mubr.bf16.gmra.mrb[0].mxu0 %v476
    %v1117 = vpop.f32.mrb[0].mxu0
    %v1118 = vadd.f32 %v1021, %v1117
    %v1119 = vpop.f32.mrb[0].mxu0
    %v1120 = vpop.f32.mrb[0].mxu0
    %v1121 = vadd.f32 %v1024, %v1120
    %v1122 = vpop.f32.mrb[0].mxu0
    %1123 = vmatprep.mubr.bf16.mxu0 %v485
    %1124 = vmatmul.mubr.bf16.gmra.mrb[0].mxu0 %v484
    %v1125 = vpop.f32.mrb[0].mxu0
    %v1126 = vadd.f32 %v1029, %v1125
    %v1127 = vpop.f32.mrb[0].mxu0
    %v1128 = vpop.f32.mrb[0].mxu0
    %v1129 = vadd.f32 %v1032, %v1128
    %v1130 = vpop.f32.mrb[0].mxu0
    %1131 = vmatprep.mubr.bf16.mxu0 %v493
    %1132 = vmatmul.mubr.bf16.gmra.mrb[0].mxu0 %v492
    %v1133 = vpop.f32.mrb[0].mxu0
    %v1134 = vadd.f32 %v1037, %v1133
    %v1135 = vpop.f32.mrb[0].mxu0
    %v1136 = vpop.f32.mrb[0].mxu0
    %v1137 = vadd.f32 %v1040, %v1136
    %v1138 = vpop.f32.mrb[0].mxu0
    %1139 = vmatprep.mubr.bf16.mxu0 %v501
    %1140 = vmatmul.mubr.bf16.gmra.mrb[0].mxu0 %v500
    %v1141 = vpop.f32.mrb[0].mxu0
    %v1142 = vadd.f32 %v1045, %v1141
    %v1143 = vpop.f32.mrb[0].mxu0
    %v1144 = vpop.f32.mrb[0].mxu0
    %v1145 = vadd.f32 %v1048, %v1144
    %v1146 = vpop.f32.mrb[0].mxu0
    %1147 = vmatprep.mubr.bf16.mxu0 %v509
    %1148 = vmatmul.mubr.bf16.gmra.mrb[0].mxu0 %v508
    %v1149 = vpop.f32.mrb[0].mxu0
    %v1150 = vadd.f32 %v1053, %v1149
    %v1151 = vpop.f32.mrb[0].mxu0
    %v1152 = vpop.f32.mrb[0].mxu0
    %v1153 = vadd.f32 %v1056, %v1152
    %v1154 = vpop.f32.mrb[0].mxu0
    %1155 = vmatprep.mubr.bf16.mxu0 %v517
    %1156 = vmatmul.mubr.bf16.gmra.mrb[0].mxu0 %v516
    %v1157 = vpop.f32.mrb[0].mxu0
    %v1158 = vadd.f32 %v1061, %v1157
    %v1159 = vpop.f32.mrb[0].mxu0
    %v1160 = vpop.f32.mrb[0].mxu0
    %v1161 = vadd.f32 %v1064, %v1160
    %v1162 = vpop.f32.mrb[0].mxu0
    %1163 = vdwg.mxu0
    %1164 = vmatprep.subr.bf16.mxu0 0
    %1165 = vmatpush1.bf16.msra.mxu0 %v874
    %1166 = vmatprep.subr.bf16.mxu0 0
    %1167 = vmatpush1.bf16.msra.mxu0 %v875
    %1168 = vmatprep.subr.bf16.mxu0 0
    %1169 = vmatpush1.bf16.msra.mxu0 %v876
    %1170 = vmatprep.subr.bf16.mxu0 0
    %1171 = vmatpush1.bf16.msra.mxu0 %v877
    %1172 = vmatprep.subr.bf16.mxu0 0
    %1173 = vmatpush1.bf16.msra.mxu0 %v878
    %1174 = vmatprep.subr.bf16.mxu0 0
    %1175 = vmatpush1.bf16.msra.mxu0 %v879
    %1176 = vmatprep.subr.bf16.mxu0 0
    %1177 = vmatpush1.bf16.msra.mxu0 %v880
    %1178 = vmatprep.subr.bf16.mxu0 0
    %1179 = vmatpush1.bf16.msra.mxu0 %v881
    %1180 = vmatprep.subr.bf16.mxu0 0
    %1181 = vmatpush1.bf16.msra.mxu0 %v882
    %1182 = vmatprep.subr.bf16.mxu0 0
    %1183 = vmatpush1.bf16.msra.mxu0 %v883
    %1184 = vmatprep.subr.bf16.mxu0 0
    %1185 = vmatpush1.bf16.msra.mxu0 %v884
    %1186 = vmatprep.subr.bf16.mxu0 0
    %1187 = vmatpush1.bf16.msra.mxu0 %v885
    %1188 = vmatprep.subr.bf16.mxu0 0
    %1189 = vmatpush1.bf16.msra.mxu0 %v886
    %1190 = vmatprep.subr.bf16.mxu0 0
    %1191 = vmatpush1.bf16.msra.mxu0 %v887
    %1192 = vmatprep.subr.bf16.mxu0 0
    %1193 = vmatpush1.bf16.msra.mxu0 %v888
    %1194 = vmatprep.subr.bf16.mxu0 0
    %1195 = vmatpush1.bf16.msra.mxu0 %v889
    %1196 = vmatprep.mubr.bf16.mxu0 %v463
    %1197 = vmatmul.mubr.bf16.gmra.mrb[0].mxu0 %v462
    %v1198 = vpop.f32.mrb[0].mxu0
    %v1199 = vadd.f32 %v1102, %v1198
    %v1200 = vpop.f32.mrb[0].mxu0
    %v1201 = vpop.f32.mrb[0].mxu0
    %v1202 = vadd.f32 %v1105, %v1201
    %v1203 = vpop.f32.mrb[0].mxu0
    %1204 = vmatprep.mubr.bf16.mxu0 %v471
    %1205 = vmatmul.mubr.bf16.gmra.mrb[0].mxu0 %v470
    %v1206 = vpop.f32.mrb[0].mxu0
    %v1207 = vadd.f32 %v1110, %v1206
    %v1208 = vpop.f32.mrb[0].mxu0
    %v1209 = vpop.f32.mrb[0].mxu0
    %v1210 = vadd.f32 %v1113, %v1209
    %v1211 = vpop.f32.mrb[0].mxu0
    %1212 = vmatprep.mubr.bf16.mxu0 %v479
    %1213 = vmatmul.mubr.bf16.gmra.mrb[0].mxu0 %v478
    %v1214 = vpop.f32.mrb[0].mxu0
    %v1215 = vadd.f32 %v1118, %v1214
    %v1216 = vpop.f32.mrb[0].mxu0
    %v1217 = vpop.f32.mrb[0].mxu0
    %v1218 = vadd.f32 %v1121, %v1217
    %v1219 = vpop.f32.mrb[0].mxu0
    %1220 = vmatprep.mubr.bf16.mxu0 %v487
    %1221 = vmatmul.mubr.bf16.gmra.mrb[0].mxu0 %v486
    %v1222 = vpop.f32.mrb[0].mxu0
    %v1223 = vadd.f32 %v1126, %v1222
    %v1224 = vpop.f32.mrb[0].mxu0
    %v1225 = vpop.f32.mrb[0].mxu0
    %v1226 = vadd.f32 %v1129, %v1225
    %v1227 = vpop.f32.mrb[0].mxu0
    %1228 = vmatprep.mubr.bf16.mxu0 %v495
    %1229 = vmatmul.mubr.bf16.gmra.mrb[0].mxu0 %v494
    %v1230 = vpop.f32.mrb[0].mxu0
    %v1231 = vadd.f32 %v1134, %v1230
    %v1232 = vpop.f32.mrb[0].mxu0
    %v1233 = vpop.f32.mrb[0].mxu0
    %v1234 = vadd.f32 %v1137, %v1233
    %v1235 = vpop.f32.mrb[0].mxu0
    %1236 = vmatprep.mubr.bf16.mxu0 %v503
    %1237 = vmatmul.mubr.bf16.gmra.mrb[0].mxu0 %v502
    %v1238 = vpop.f32.mrb[0].mxu0
    %v1239 = vadd.f32 %v1142, %v1238
    %v1240 = vpop.f32.mrb[0].mxu0
    %v1241 = vpop.f32.mrb[0].mxu0
    %v1242 = vadd.f32 %v1145, %v1241
    %v1243 = vpop.f32.mrb[0].mxu0
    %1244 = vmatprep.mubr.bf16.mxu0 %v511
    %1245 = vmatmul.mubr.bf16.gmra.mrb[0].mxu0 %v510
    %v1246 = vpop.f32.mrb[0].mxu0
    %v1247 = vadd.f32 %v1150, %v1246
    %v1248 = vpop.f32.mrb[0].mxu0
    %v1249 = vpop.f32.mrb[0].mxu0
    %v1250 = vadd.f32 %v1153, %v1249
    %v1251 = vpop.f32.mrb[0].mxu0
    %1252 = vmatprep.mubr.bf16.mxu0 %v519
    %1253 = vmatmul.mubr.bf16.gmra.mrb[0].mxu0 %v518
    %v1254 = vpop.f32.mrb[0].mxu0
    %v1255 = vadd.f32 %v1158, %v1254
    %v1256 = vpop.f32.mrb[0].mxu0
    %v1257 = vpop.f32.mrb[0].mxu0
    %v1258 = vadd.f32 %v1161, %v1257
    %v1259 = vpop.f32.mrb[0].mxu0
    %1260 = vdwg.mxu0
    %1261 = vmatprep.subr.bf16.mxu0 0
    %1262 = vmatpush1.bf16.msra.mxu0 %v890
    %1263 = vmatprep.subr.bf16.mxu0 0
    %1264 = vmatpush1.bf16.msra.mxu0 %v891
    %1265 = vmatprep.subr.bf16.mxu0 0
    %1266 = vmatpush1.bf16.msra.mxu0 %v892
    %1267 = vmatprep.subr.bf16.mxu0 0
    %1268 = vmatpush1.bf16.msra.mxu0 %v893
    %1269 = vmatprep.subr.bf16.mxu0 0
    %1270 = vmatpush1.bf16.msra.mxu0 %v894
    %1271 = vmatprep.subr.bf16.mxu0 0
    %1272 = vmatpush1.bf16.msra.mxu0 %v895
    %1273 = vmatprep.subr.bf16.mxu0 0
    %1274 = vmatpush1.bf16.msra.mxu0 %v896
    %1275 = vmatprep.subr.bf16.mxu0 0
    %1276 = vmatpush1.bf16.msra.mxu0 %v897
    %1277 = vmatprep.subr.bf16.mxu0 0
    %1278 = vmatpush1.bf16.msra.mxu0 %v898
    %1279 = vmatprep.subr.bf16.mxu0 0
    %1280 = vmatpush1.bf16.msra.mxu0 %v899
    %1281 = vmatprep.subr.bf16.mxu0 0
    %1282 = vmatpush1.bf16.msra.mxu0 %v900
    %1283 = vmatprep.subr.bf16.mxu0 0
    %1284 = vmatpush1.bf16.msra.mxu0 %v901
    %1285 = vmatprep.subr.bf16.mxu0 0
    %1286 = vmatpush1.bf16.msra.mxu0 %v902
    %1287 = vmatprep.subr.bf16.mxu0 0
    %1288 = vmatpush1.bf16.msra.mxu0 %v903
    %1289 = vmatprep.subr.bf16.mxu0 0
    %1290 = vmatpush1.bf16.msra.mxu0 %v904
    %1291 = vmatprep.subr.bf16.mxu0 0
    %1292 = vmatpush1.bf16.msra.mxu0 %v905
    %1293 = vmatprep.mubr.bf16.mxu0 %v465
    %1294 = vmatmul.mubr.bf16.gmra.mrb[0].mxu0 %v464
    %v1295 = vpop.f32.mrb[0].mxu0
    %v1296 = vadd.f32 %v1199, %v1295
    %v1297 = vpop.f32.mrb[0].mxu0
    %v1298 = vpop.f32.mrb[0].mxu0
    %v1299 = vadd.f32 %v1202, %v1298
    %v1300 = vpop.f32.mrb[0].mxu0
    %1301 = vmatprep.mubr.bf16.mxu0 %v473
    %1302 = vmatmul.mubr.bf16.gmra.mrb[0].mxu0 %v472
    %v1303 = vpop.f32.mrb[0].mxu0
    %v1304 = vadd.f32 %v1207, %v1303
    %v1305 = vpop.f32.mrb[0].mxu0
    %v1306 = vpop.f32.mrb[0].mxu0
    %v1307 = vadd.f32 %v1210, %v1306
    %v1308 = vpop.f32.mrb[0].mxu0
    %1309 = vmatprep.mubr.bf16.mxu0 %v481
    %1310 = vmatmul.mubr.bf16.gmra.mrb[0].mxu0 %v480
    %v1311 = vpop.f32.mrb[0].mxu0
    %v1312 = vadd.f32 %v1215, %v1311
    %v1313 = vpop.f32.mrb[0].mxu0
    %v1314 = vpop.f32.mrb[0].mxu0
    %v1315 = vadd.f32 %v1218, %v1314
    %v1316 = vpop.f32.mrb[0].mxu0
    %1317 = vmatprep.mubr.bf16.mxu0 %v489
    %1318 = vmatmul.mubr.bf16.gmra.mrb[0].mxu0 %v488
    %v1319 = vpop.f32.mrb[0].mxu0
    %v1320 = vadd.f32 %v1223, %v1319
    %v1321 = vpop.f32.mrb[0].mxu0
    %v1322 = vpop.f32.mrb[0].mxu0
    %v1323 = vadd.f32 %v1226, %v1322
    %v1324 = vpop.f32.mrb[0].mxu0
    %1325 = vmatprep.mubr.bf16.mxu0 %v497
    %1326 = vmatmul.mubr.bf16.gmra.mrb[0].mxu0 %v496
    %v1327 = vpop.f32.mrb[0].mxu0
    %v1328 = vadd.f32 %v1231, %v1327
    %v1329 = vpop.f32.mrb[0].mxu0
    %v1330 = vpop.f32.mrb[0].mxu0
    %v1331 = vadd.f32 %v1234, %v1330
    %v1332 = vpop.f32.mrb[0].mxu0
    %1333 = vmatprep.mubr.bf16.mxu0 %v505
    %1334 = vmatmul.mubr.bf16.gmra.mrb[0].mxu0 %v504
    %v1335 = vpop.f32.mrb[0].mxu0
    %v1336 = vadd.f32 %v1239, %v1335
    %v1337 = vpop.f32.mrb[0].mxu0
    %v1338 = vpop.f32.mrb[0].mxu0
    %v1339 = vadd.f32 %v1242, %v1338
    %v1340 = vpop.f32.mrb[0].mxu0
    %1341 = vmatprep.mubr.bf16.mxu0 %v513
    %1342 = vmatmul.mubr.bf16.gmra.mrb[0].mxu0 %v512
    %v1343 = vpop.f32.mrb[0].mxu0
    %v1344 = vadd.f32 %v1247, %v1343
    %v1345 = vpop.f32.mrb[0].mxu0
    %v1346 = vpop.f32.mrb[0].mxu0
    %v1347 = vadd.f32 %v1250, %v1346
    %v1348 = vpop.f32.mrb[0].mxu0
    %1349 = vmatprep.mubr.bf16.mxu0 %v521
    %1350 = vmatmul.mubr.bf16.gmra.mrb[0].mxu0 %v520
    %v1351 = vpop.f32.mrb[0].mxu0
    %v1352 = vadd.f32 %v1255, %v1351
    %v1353 = vpop.f32.mrb[0].mxu0
    %v1354 = vpop.f32.mrb[0].mxu0
    %v1355 = vadd.f32 %v1258, %v1354
    %v1356 = vpop.f32.mrb[0].mxu0
    %1357 = vdwg.mxu0
    %v1358 = vmax.f32 %v1296, 0.0
    %v1359 = vmax.f32 %v1299, 0.0
    %v1360 = vmax.f32 %v1304, 0.0
    %v1361 = vmax.f32 %v1307, 0.0
    %v1362 = vmax.f32 %v1312, 0.0
    %v1363 = vmax.f32 %v1315, 0.0
    %v1364 = vmax.f32 %v1320, 0.0
    %v1365 = vmax.f32 %v1323, 0.0
    %v1366 = vmax.f32 %v1328, 0.0
    %v1367 = vmax.f32 %v1331, 0.0
    %v1368 = vmax.f32 %v1336, 0.0
    %v1369 = vmax.f32 %v1339, 0.0
    %v1370 = vmax.f32 %v1344, 0.0
    %v1371 = vmax.f32 %v1347, 0.0
    %v1372 = vmax.f32 %v1352, 0.0
    %v1373 = vmax.f32 %v1355, 0.0
    %1374 = vst [vmem:[#allocation9] sm:$0xff] %v1358
    %1375 = vst [vmem:[#allocation9 + $0x8] sm:$0xff] %v1359
    %1376 = vst [vmem:[#allocation9 + $0x10] sm:$0xff] %v1360
    %1377 = vst [vmem:[#allocation9 + $0x18] sm:$0xff] %v1361
    %1378 = vst [vmem:[#allocation9 + $0x20] sm:$0xff] %v1362
    %1379 = vst [vmem:[#allocation9 + $0x28] sm:$0xff] %v1363
    %1380 = vst [vmem:[#allocation9 + $0x30] sm:$0xff] %v1364
    %1381 = vst [vmem:[#allocation9 + $0x38] sm:$0xff] %v1365
    %1382 = vst [vmem:[#allocation9 + $0x40] sm:$0xff] %v1366
    %1383 = vst [vmem:[#allocation9 + $0x48] sm:$0xff] %v1367
    %1384 = vst [vmem:[#allocation9 + $0x50] sm:$0xff] %v1368
    %1385 = vst [vmem:[#allocation9 + $0x58] sm:$0xff] %v1369
    %1386 = vst [vmem:[#allocation9 + $0x60] sm:$0xff] %v1370
    %1387 = vst [vmem:[#allocation9 + $0x68] sm:$0xff] %v1371
    %1388 = vst [vmem:[#allocation9 + $0x70] sm:$0xff] %v1372
    %1389 = vst [vmem:[#allocation9 + $0x78] sm:$0xff] %v1373
    %v1390 = vpack.c.bf16 %v1359, %v1358
    %v1391 = vpack.c.bf16 %v1361, %v1360
    %v1392 = vpack.c.bf16 %v1363, %v1362
    %v1393 = vpack.c.bf16 %v1365, %v1364
    %v1394 = vpack.c.bf16 %v1367, %v1366
    %v1395 = vpack.c.bf16 %v1369, %v1368
    %v1396 = vpack.c.bf16 %v1371, %v1370
    %v1397 = vpack.c.bf16 %v1373, %v1372
    %v1398 = vld [vmem:[#allocation7] sm:$0xff]
    %v1399 = vld [vmem:[#allocation7 + $0x8] sm:$0xff]
    %v1400 = vld [vmem:[#allocation7 + $0x10] sm:$0xff]
    %v1401 = vld [vmem:[#allocation7 + $0x18] sm:$0xff]
    %v1402 = vld [vmem:[#allocation7 + $0x20] sm:$0xff]
    %v1403 = vld [vmem:[#allocation7 + $0x28] sm:$0xff]
    %v1404 = vld [vmem:[#allocation7 + $0x30] sm:$0xff]
    %v1405 = vld [vmem:[#allocation7 + $0x38] sm:$0xff]
    %v1406 = vld [vmem:[#allocation7 + $0x40] sm:$0xff]
    %v1407 = vld [vmem:[#allocation7 + $0x48] sm:$0xff]
    %v1408 = vld [vmem:[#allocation7 + $0x50] sm:$0xff]
    %v1409 = vld [vmem:[#allocation7 + $0x58] sm:$0xff]
    %v1410 = vld [vmem:[#allocation7 + $0x60] sm:$0xff]
    %v1411 = vld [vmem:[#allocation7 + $0x68] sm:$0xff]
    %v1412 = vld [vmem:[#allocation7 + $0x70] sm:$0xff]
    %v1413 = vld [vmem:[#allocation7 + $0x78] sm:$0xff]
    %v1414 = vld [vmem:[#allocation7 + $0x80] sm:$0xff]
    %v1415 = vld [vmem:[#allocation7 + $0x88] sm:$0xff]
    %v1416 = vld [vmem:[#allocation7 + $0x90] sm:$0xff]
    %v1417 = vld [vmem:[#allocation7 + $0x98] sm:$0xff]
    %v1418 = vld [vmem:[#allocation7 + $0xa0] sm:$0xff]
    %v1419 = vld [vmem:[#allocation7 + $0xa8] sm:$0xff]
    %v1420 = vld [vmem:[#allocation7 + $0xb0] sm:$0xff]
    %v1421 = vld [vmem:[#allocation7 + $0xb8] sm:$0xff]
    %v1422 = vld [vmem:[#allocation7 + $0xc0] sm:$0xff]
    %v1423 = vld [vmem:[#allocation7 + $0xc8] sm:$0xff]
    %v1424 = vld [vmem:[#allocation7 + $0xd0] sm:$0xff]
    %v1425 = vld [vmem:[#allocation7 + $0xd8] sm:$0xff]
    %v1426 = vld [vmem:[#allocation7 + $0xe0] sm:$0xff]
    %v1427 = vld [vmem:[#allocation7 + $0xe8] sm:$0xff]
    %v1428 = vld [vmem:[#allocation7 + $0xf0] sm:$0xff]
    %v1429 = vld [vmem:[#allocation7 + $0xf8] sm:$0xff]
    %v1430 = vld [vmem:[#allocation7 + $0x100] sm:$0xff]
    %v1431 = vld [vmem:[#allocation7 + $0x108] sm:$0xff]
    %v1432 = vld [vmem:[#allocation7 + $0x110] sm:$0xff]
    %v1433 = vld [vmem:[#allocation7 + $0x118] sm:$0xff]
    %v1434 = vld [vmem:[#allocation7 + $0x120] sm:$0xff]
    %v1435 = vld [vmem:[#allocation7 + $0x128] sm:$0xff]
    %v1436 = vld [vmem:[#allocation7 + $0x130] sm:$0xff]
    %v1437 = vld [vmem:[#allocation7 + $0x138] sm:$0xff]
    %v1438 = vld [vmem:[#allocation7 + $0x140] sm:$0xff]
    %v1439 = vld [vmem:[#allocation7 + $0x148] sm:$0xff]
    %v1440 = vld [vmem:[#allocation7 + $0x150] sm:$0xff]
    %v1441 = vld [vmem:[#allocation7 + $0x158] sm:$0xff]
    %v1442 = vld [vmem:[#allocation7 + $0x160] sm:$0xff]
    %v1443 = vld [vmem:[#allocation7 + $0x168] sm:$0xff]
    %v1444 = vld [vmem:[#allocation7 + $0x170] sm:$0xff]
    %v1445 = vld [vmem:[#allocation7 + $0x178] sm:$0xff]
    %v1446 = vld [vmem:[#allocation7 + $0x180] sm:$0xff]
    %v1447 = vld [vmem:[#allocation7 + $0x188] sm:$0xff]
    %v1448 = vld [vmem:[#allocation7 + $0x190] sm:$0xff]
    %v1449 = vld [vmem:[#allocation7 + $0x198] sm:$0xff]
    %v1450 = vld [vmem:[#allocation7 + $0x1a0] sm:$0xff]
    %v1451 = vld [vmem:[#allocation7 + $0x1a8] sm:$0xff]
    %v1452 = vld [vmem:[#allocation7 + $0x1b0] sm:$0xff]
    %v1453 = vld [vmem:[#allocation7 + $0x1b8] sm:$0xff]
    %v1454 = vld [vmem:[#allocation7 + $0x1c0] sm:$0xff]
    %v1455 = vld [vmem:[#allocation7 + $0x1c8] sm:$0xff]
    %v1456 = vld [vmem:[#allocation7 + $0x1d0] sm:$0xff]
    %v1457 = vld [vmem:[#allocation7 + $0x1d8] sm:$0xff]
    %v1458 = vld [vmem:[#allocation7 + $0x1e0] sm:$0xff]
    %v1459 = vld [vmem:[#allocation7 + $0x1e8] sm:$0xff]
    %v1460 = vld [vmem:[#allocation7 + $0x1f0] sm:$0xff]
    %v1461 = vld [vmem:[#allocation7 + $0x1f8] sm:$0xff]
    %v1463 = vlaneseq
    %v1464 = vshrl.u32 %v1463, 7
    %v1465 = vsub.s32 0, %v1464
    %v1466 = vrot.slane %v67, %v1465
    %v1467 = vlaneseq
    %v1468 = vshrl.u32 %v1467, 7
    %v1469 = vsub.s32 1, %v1468
    %v1470 = vrot.slane %v67, %v1469
    %v1471 = vlaneseq
    %v1472 = vshrl.u32 %v1471, 7
    %v1473 = vsub.s32 2, %v1472
    %v1474 = vrot.slane %v67, %v1473
    %v1475 = vlaneseq
    %v1476 = vshrl.u32 %v1475, 7
    %v1477 = vsub.s32 3, %v1476
    %v1478 = vrot.slane %v67, %v1477
    %v1479 = vlaneseq
    %v1480 = vshrl.u32 %v1479, 7
    %v1481 = vsub.s32 4, %v1480
    %v1482 = vrot.slane %v67, %v1481
    %v1483 = vlaneseq
    %v1484 = vshrl.u32 %v1483, 7
    %v1485 = vsub.s32 5, %v1484
    %v1486 = vrot.slane %v67, %v1485
    %v1487 = vlaneseq
    %v1488 = vshrl.u32 %v1487, 7
    %v1489 = vsub.s32 6, %v1488
    %v1490 = vrot.slane %v67, %v1489
    %v1491 = vlaneseq
    %v1492 = vshrl.u32 %v1491, 7
    %v1493 = vsub.s32 7, %v1492
    %v1494 = vrot.slane %v67, %v1493
    %v1567 = vunpack.c.l.b16 %v1398
    %v1568 = vunpack.c.h.b16 %v1398
    %v1569 = vunpack.c.l.b16 %v1399
    %v1570 = vunpack.c.h.b16 %v1399
    %v1571 = vunpack.c.l.b16 %v1400
    %v1572 = vunpack.c.h.b16 %v1400
    %v1573 = vunpack.c.l.b16 %v1401
    %v1574 = vunpack.c.h.b16 %v1401
    %v1575 = vunpack.c.l.b16 %v1402
    %v1576 = vunpack.c.h.b16 %v1402
    %v1577 = vunpack.c.l.b16 %v1403
    %v1578 = vunpack.c.h.b16 %v1403
    %v1579 = vunpack.c.l.b16 %v1404
    %v1580 = vunpack.c.h.b16 %v1404
    %v1581 = vunpack.c.l.b16 %v1405
    %v1582 = vunpack.c.h.b16 %v1405
    %v1583 = vunpack.c.l.b16 %v1406
    %v1584 = vunpack.c.h.b16 %v1406
    %v1585 = vunpack.c.l.b16 %v1407
    %v1586 = vunpack.c.h.b16 %v1407
    %v1587 = vunpack.c.l.b16 %v1408
    %v1588 = vunpack.c.h.b16 %v1408
    %v1589 = vunpack.c.l.b16 %v1409
    %v1590 = vunpack.c.h.b16 %v1409
    %v1591 = vunpack.c.l.b16 %v1410
    %v1592 = vunpack.c.h.b16 %v1410
    %v1593 = vunpack.c.l.b16 %v1411
    %v1594 = vunpack.c.h.b16 %v1411
    %v1595 = vunpack.c.l.b16 %v1412
    %v1596 = vunpack.c.h.b16 %v1412
    %v1597 = vunpack.c.l.b16 %v1413
    %v1598 = vunpack.c.h.b16 %v1413
    %v1599 = vunpack.c.l.b16 %v1414
    %v1600 = vunpack.c.h.b16 %v1414
    %v1601 = vunpack.c.l.b16 %v1415
    %v1602 = vunpack.c.h.b16 %v1415
    %v1603 = vunpack.c.l.b16 %v1416
    %v1604 = vunpack.c.h.b16 %v1416
    %v1605 = vunpack.c.l.b16 %v1417
    %v1606 = vunpack.c.h.b16 %v1417
    %v1607 = vunpack.c.l.b16 %v1418
    %v1608 = vunpack.c.h.b16 %v1418
    %v1609 = vunpack.c.l.b16 %v1419
    %v1610 = vunpack.c.h.b16 %v1419
    %v1611 = vunpack.c.l.b16 %v1420
    %v1612 = vunpack.c.h.b16 %v1420
    %v1613 = vunpack.c.l.b16 %v1421
    %v1614 = vunpack.c.h.b16 %v1421
    %v1615 = vunpack.c.l.b16 %v1422
    %v1616 = vunpack.c.h.b16 %v1422
    %v1617 = vunpack.c.l.b16 %v1423
    %v1618 = vunpack.c.h.b16 %v1423
    %v1619 = vunpack.c.l.b16 %v1424
    %v1620 = vunpack.c.h.b16 %v1424
    %v1621 = vunpack.c.l.b16 %v1425
    %v1622 = vunpack.c.h.b16 %v1425
    %v1623 = vunpack.c.l.b16 %v1426
    %v1624 = vunpack.c.h.b16 %v1426
    %v1625 = vunpack.c.l.b16 %v1427
    %v1626 = vunpack.c.h.b16 %v1427
    %v1627 = vunpack.c.l.b16 %v1428
    %v1628 = vunpack.c.h.b16 %v1428
    %v1629 = vunpack.c.l.b16 %v1429
    %v1630 = vunpack.c.h.b16 %v1429
    %v1631 = vunpack.c.l.b16 %v1430
    %v1632 = vunpack.c.h.b16 %v1430
    %v1633 = vunpack.c.l.b16 %v1431
    %v1634 = vunpack.c.h.b16 %v1431
    %v1635 = vunpack.c.l.b16 %v1432
    %v1636 = vunpack.c.h.b16 %v1432
    %v1637 = vunpack.c.l.b16 %v1433
    %v1638 = vunpack.c.h.b16 %v1433
    %v1639 = vunpack.c.l.b16 %v1434
    %v1640 = vunpack.c.h.b16 %v1434
    %v1641 = vunpack.c.l.b16 %v1435
    %v1642 = vunpack.c.h.b16 %v1435
    %v1643 = vunpack.c.l.b16 %v1436
    %v1644 = vunpack.c.h.b16 %v1436
    %v1645 = vunpack.c.l.b16 %v1437
    %v1646 = vunpack.c.h.b16 %v1437
    %v1647 = vunpack.c.l.b16 %v1438
    %v1648 = vunpack.c.h.b16 %v1438
    %v1649 = vunpack.c.l.b16 %v1439
    %v1650 = vunpack.c.h.b16 %v1439
    %v1651 = vunpack.c.l.b16 %v1440
    %v1652 = vunpack.c.h.b16 %v1440
    %v1653 = vunpack.c.l.b16 %v1441
    %v1654 = vunpack.c.h.b16 %v1441
    %v1655 = vunpack.c.l.b16 %v1442
    %v1656 = vunpack.c.h.b16 %v1442
    %v1657 = vunpack.c.l.b16 %v1443
    %v1658 = vunpack.c.h.b16 %v1443
    %v1659 = vunpack.c.l.b16 %v1444
    %v1660 = vunpack.c.h.b16 %v1444
    %v1661 = vunpack.c.l.b16 %v1445
    %v1662 = vunpack.c.h.b16 %v1445
    %v1663 = vunpack.c.l.b16 %v1446
    %v1664 = vunpack.c.h.b16 %v1446
    %v1665 = vunpack.c.l.b16 %v1447
    %v1666 = vunpack.c.h.b16 %v1447
    %v1667 = vunpack.c.l.b16 %v1448
    %v1668 = vunpack.c.h.b16 %v1448
    %v1669 = vunpack.c.l.b16 %v1449
    %v1670 = vunpack.c.h.b16 %v1449
    %v1671 = vunpack.c.l.b16 %v1450
    %v1672 = vunpack.c.h.b16 %v1450
    %v1673 = vunpack.c.l.b16 %v1451
    %v1674 = vunpack.c.h.b16 %v1451
    %v1675 = vunpack.c.l.b16 %v1452
    %v1676 = vunpack.c.h.b16 %v1452
    %v1677 = vunpack.c.l.b16 %v1453
    %v1678 = vunpack.c.h.b16 %v1453
    %v1679 = vunpack.c.l.b16 %v1454
    %v1680 = vunpack.c.h.b16 %v1454
    %v1681 = vunpack.c.l.b16 %v1455
    %v1682 = vunpack.c.h.b16 %v1455
    %v1683 = vunpack.c.l.b16 %v1456
    %v1684 = vunpack.c.h.b16 %v1456
    %v1685 = vunpack.c.l.b16 %v1457
    %v1686 = vunpack.c.h.b16 %v1457
    %v1687 = vunpack.c.l.b16 %v1458
    %v1688 = vunpack.c.h.b16 %v1458
    %v1689 = vunpack.c.l.b16 %v1459
    %v1690 = vunpack.c.h.b16 %v1459
    %v1691 = vunpack.c.l.b16 %v1460
    %v1692 = vunpack.c.h.b16 %v1460
    %v1693 = vunpack.c.l.b16 %v1461
    %v1694 = vunpack.c.h.b16 %v1461
    %v1695 = vpack.c.b16 %v1575, %v1567
    %v1696 = vpack.c.b16 %v1576, %v1568
    %v1697 = vpack.c.b16 %v1577, %v1569
    %v1698 = vpack.c.b16 %v1578, %v1570
    %v1699 = vpack.c.b16 %v1579, %v1571
    %v1700 = vpack.c.b16 %v1580, %v1572
    %v1701 = vpack.c.b16 %v1581, %v1573
    %v1702 = vpack.c.b16 %v1582, %v1574
    %v1703 = vpack.c.b16 %v1591, %v1583
    %v1704 = vpack.c.b16 %v1592, %v1584
    %v1705 = vpack.c.b16 %v1593, %v1585
    %v1706 = vpack.c.b16 %v1594, %v1586
    %v1707 = vpack.c.b16 %v1595, %v1587
    %v1708 = vpack.c.b16 %v1596, %v1588
    %v1709 = vpack.c.b16 %v1597, %v1589
    %v1710 = vpack.c.b16 %v1598, %v1590
    %v1711 = vpack.c.b16 %v1607, %v1599
    %v1712 = vpack.c.b16 %v1608, %v1600
    %v1713 = vpack.c.b16 %v1609, %v1601
    %v1714 = vpack.c.b16 %v1610, %v1602
    %v1715 = vpack.c.b16 %v1611, %v1603
    %v1716 = vpack.c.b16 %v1612, %v1604
    %v1717 = vpack.c.b16 %v1613, %v1605
    %v1718 = vpack.c.b16 %v1614, %v1606
    %v1719 = vpack.c.b16 %v1623, %v1615
    %v1720 = vpack.c.b16 %v1624, %v1616
    %v1721 = vpack.c.b16 %v1625, %v1617
    %v1722 = vpack.c.b16 %v1626, %v1618
    %v1723 = vpack.c.b16 %v1627, %v1619
    %v1724 = vpack.c.b16 %v1628, %v1620
    %v1725 = vpack.c.b16 %v1629, %v1621
    %v1726 = vpack.c.b16 %v1630, %v1622
    %v1727 = vpack.c.b16 %v1639, %v1631
    %v1728 = vpack.c.b16 %v1640, %v1632
    %v1729 = vpack.c.b16 %v1641, %v1633
    %v1730 = vpack.c.b16 %v1642, %v1634
    %v1731 = vpack.c.b16 %v1643, %v1635
    %v1732 = vpack.c.b16 %v1644, %v1636
    %v1733 = vpack.c.b16 %v1645, %v1637
    %v1734 = vpack.c.b16 %v1646, %v1638
    %v1735 = vpack.c.b16 %v1655, %v1647
    %v1736 = vpack.c.b16 %v1656, %v1648
    %v1737 = vpack.c.b16 %v1657, %v1649
    %v1738 = vpack.c.b16 %v1658, %v1650
    %v1739 = vpack.c.b16 %v1659, %v1651
    %v1740 = vpack.c.b16 %v1660, %v1652
    %v1741 = vpack.c.b16 %v1661, %v1653
    %v1742 = vpack.c.b16 %v1662, %v1654
    %v1743 = vpack.c.b16 %v1671, %v1663
    %v1744 = vpack.c.b16 %v1672, %v1664
    %v1745 = vpack.c.b16 %v1673, %v1665
    %v1746 = vpack.c.b16 %v1674, %v1666
    %v1747 = vpack.c.b16 %v1675, %v1667
    %v1748 = vpack.c.b16 %v1676, %v1668
    %v1749 = vpack.c.b16 %v1677, %v1669
    %v1750 = vpack.c.b16 %v1678, %v1670
    %v1751 = vpack.c.b16 %v1687, %v1679
    %v1752 = vpack.c.b16 %v1688, %v1680
    %v1753 = vpack.c.b16 %v1689, %v1681
    %v1754 = vpack.c.b16 %v1690, %v1682
    %v1755 = vpack.c.b16 %v1691, %v1683
    %v1756 = vpack.c.b16 %v1692, %v1684
    %v1757 = vpack.c.b16 %v1693, %v1685
    %v1758 = vpack.c.b16 %v1694, %v1686
    %1823 = vmatprep.subr.bf16.mxu0 %v1696
    %1824 = vmatpush1.bf16.msra.mxu0 %v1695
    %1825 = vmatprep.subr.bf16.mxu0 %v1704
    %1826 = vmatpush1.bf16.msra.mxu0 %v1703
    %1827 = vmatprep.subr.bf16.mxu0 %v1712
    %1828 = vmatpush1.bf16.msra.mxu0 %v1711
    %1829 = vmatprep.subr.bf16.mxu0 %v1720
    %1830 = vmatpush1.bf16.msra.mxu0 %v1719
    %1831 = vmatprep.subr.bf16.mxu0 %v1728
    %1832 = vmatpush1.bf16.msra.mxu0 %v1727
    %1833 = vmatprep.subr.bf16.mxu0 %v1736
    %1834 = vmatpush1.bf16.msra.mxu0 %v1735
    %1835 = vmatprep.subr.bf16.mxu0 %v1744
    %1836 = vmatpush1.bf16.msra.mxu0 %v1743
    %1837 = vmatprep.subr.bf16.mxu0 %v1752
    %1838 = vmatpush1.bf16.msra.mxu0 %v1751
    %1839 = vmatprep.subr.bf16.mxu0 0
    %1840 = vmatpush1.bf16.msra.mxu0 0
    %1841 = vmatprep.subr.bf16.mxu0 0
    %1842 = vmatpush1.bf16.msra.mxu0 0
    %1843 = vmatprep.subr.bf16.mxu0 0
    %1844 = vmatpush1.bf16.msra.mxu0 0
    %1845 = vmatprep.subr.bf16.mxu0 0
    %1846 = vmatpush1.bf16.msra.mxu0 0
    %1847 = vmatprep.subr.bf16.mxu0 0
    %1848 = vmatpush1.bf16.msra.mxu0 0
    %1849 = vmatprep.subr.bf16.mxu0 0
    %1850 = vmatpush1.bf16.msra.mxu0 0
    %1851 = vmatprep.subr.bf16.mxu0 0
    %1852 = vmatpush1.bf16.msra.mxu0 0
    %1853 = vmatprep.subr.bf16.mxu0 0
    %1854 = vmatpush1.bf16.msra.mxu0 0
    %1855 = vmatprep.mubr.bf16.mxu0 0
    %1856 = vmatmul.mubr.bf16.gmra.mrb[0].mxu0 %v1390
    %v1857 = vpop.f32.mrb[0].mxu0
    %v1858 = vadd.f32 %v1466, %v1857
    %v1859 = vpop.f32.mrb[0].mxu0
    %v1860 = vadd.f32 %v1470, %v1859
    %v1861 = vpop.f32.mrb[0].mxu0
    %v1862 = vadd.f32 %v1466, %v1861
    %v1863 = vpop.f32.mrb[0].mxu0
    %v1864 = vadd.f32 %v1470, %v1863
    %1865 = vmatprep.mubr.bf16.mxu0 0
    %1866 = vmatmul.mubr.bf16.gmra.mrb[0].mxu0 %v1391
    %v1867 = vpop.f32.mrb[0].mxu0
    %v1868 = vadd.f32 %v1466, %v1867
    %v1869 = vpop.f32.mrb[0].mxu0
    %v1870 = vadd.f32 %v1470, %v1869
    %v1871 = vpop.f32.mrb[0].mxu0
    %v1872 = vadd.f32 %v1466, %v1871
    %v1873 = vpop.f32.mrb[0].mxu0
    %v1874 = vadd.f32 %v1470, %v1873
    %1875 = vmatprep.mubr.bf16.mxu0 0
    %1876 = vmatmul.mubr.bf16.gmra.mrb[0].mxu0 %v1392
    %v1877 = vpop.f32.mrb[0].mxu0
    %v1878 = vadd.f32 %v1466, %v1877
    %v1879 = vpop.f32.mrb[0].mxu0
    %v1880 = vadd.f32 %v1470, %v1879
    %v1881 = vpop.f32.mrb[0].mxu0
    %v1882 = vadd.f32 %v1466, %v1881
    %v1883 = vpop.f32.mrb[0].mxu0
    %v1884 = vadd.f32 %v1470, %v1883
    %1885 = vmatprep.mubr.bf16.mxu0 0
    %1886 = vmatmul.mubr.bf16.gmra.mrb[0].mxu0 %v1393
    %v1887 = vpop.f32.mrb[0].mxu0
    %v1888 = vadd.f32 %v1466, %v1887
    %v1889 = vpop.f32.mrb[0].mxu0
    %v1890 = vadd.f32 %v1470, %v1889
    %v1891 = vpop.f32.mrb[0].mxu0
    %v1892 = vadd.f32 %v1466, %v1891
    %v1893 = vpop.f32.mrb[0].mxu0
    %v1894 = vadd.f32 %v1470, %v1893
    %1895 = vmatprep.mubr.bf16.mxu0 0
    %1896 = vmatmul.mubr.bf16.gmra.mrb[0].mxu0 %v1394
    %v1897 = vpop.f32.mrb[0].mxu0
    %v1898 = vadd.f32 %v1466, %v1897
    %v1899 = vpop.f32.mrb[0].mxu0
    %v1900 = vadd.f32 %v1470, %v1899
    %v1901 = vpop.f32.mrb[0].mxu0
    %v1902 = vadd.f32 %v1466, %v1901
    %v1903 = vpop.f32.mrb[0].mxu0
    %v1904 = vadd.f32 %v1470, %v1903
    %1905 = vmatprep.mubr.bf16.mxu0 0
    %1906 = vmatmul.mubr.bf16.gmra.mrb[0].mxu0 %v1395
    %v1907 = vpop.f32.mrb[0].mxu0
    %v1908 = vadd.f32 %v1466, %v1907
    %v1909 = vpop.f32.mrb[0].mxu0
    %v1910 = vadd.f32 %v1470, %v1909
    %v1911 = vpop.f32.mrb[0].mxu0
    %v1912 = vadd.f32 %v1466, %v1911
    %v1913 = vpop.f32.mrb[0].mxu0
    %v1914 = vadd.f32 %v1470, %v1913
    %1915 = vmatprep.mubr.bf16.mxu0 0
    %1916 = vmatmul.mubr.bf16.gmra.mrb[0].mxu0 %v1396
    %v1917 = vpop.f32.mrb[0].mxu0
    %v1918 = vadd.f32 %v1466, %v1917
    %v1919 = vpop.f32.mrb[0].mxu0
    %v1920 = vadd.f32 %v1470, %v1919
    %v1921 = vpop.f32.mrb[0].mxu0
    %v1922 = vadd.f32 %v1466, %v1921
    %v1923 = vpop.f32.mrb[0].mxu0
    %v1924 = vadd.f32 %v1470, %v1923
    %1925 = vmatprep.mubr.bf16.mxu0 0
    %1926 = vmatmul.mubr.bf16.gmra.mrb[0].mxu0 %v1397
    %v1927 = vpop.f32.mrb[0].mxu0
    %v1928 = vadd.f32 %v1466, %v1927
    %v1929 = vpop.f32.mrb[0].mxu0
    %v1930 = vadd.f32 %v1470, %v1929
    %v1931 = vpop.f32.mrb[0].mxu0
    %v1932 = vadd.f32 %v1466, %v1931
    %v1933 = vpop.f32.mrb[0].mxu0
    %v1934 = vadd.f32 %v1470, %v1933
    %1935 = vdwg.mxu0
    %1936 = vmatprep.subr.bf16.mxu0 %v1698
    %1937 = vmatpush1.bf16.msra.mxu0 %v1697
    %1938 = vmatprep.subr.bf16.mxu0 %v1706
    %1939 = vmatpush1.bf16.msra.mxu0 %v1705
    %1940 = vmatprep.subr.bf16.mxu0 %v1714
    %1941 = vmatpush1.bf16.msra.mxu0 %v1713
    %1942 = vmatprep.subr.bf16.mxu0 %v1722
    %1943 = vmatpush1.bf16.msra.mxu0 %v1721
    %1944 = vmatprep.subr.bf16.mxu0 %v1730
    %1945 = vmatpush1.bf16.msra.mxu0 %v1729
    %1946 = vmatprep.subr.bf16.mxu0 %v1738
    %1947 = vmatpush1.bf16.msra.mxu0 %v1737
    %1948 = vmatprep.subr.bf16.mxu0 %v1746
    %1949 = vmatpush1.bf16.msra.mxu0 %v1745
    %1950 = vmatprep.subr.bf16.mxu0 %v1754
    %1951 = vmatpush1.bf16.msra.mxu0 %v1753
    %1952 = vmatprep.subr.bf16.mxu0 0
    %1953 = vmatpush1.bf16.msra.mxu0 0
    %1954 = vmatprep.subr.bf16.mxu0 0
    %1955 = vmatpush1.bf16.msra.mxu0 0
    %1956 = vmatprep.subr.bf16.mxu0 0
    %1957 = vmatpush1.bf16.msra.mxu0 0
    %1958 = vmatprep.subr.bf16.mxu0 0
    %1959 = vmatpush1.bf16.msra.mxu0 0
    %1960 = vmatprep.subr.bf16.mxu0 0
    %1961 = vmatpush1.bf16.msra.mxu0 0
    %1962 = vmatprep.subr.bf16.mxu0 0
    %1963 = vmatpush1.bf16.msra.mxu0 0
    %1964 = vmatprep.subr.bf16.mxu0 0
    %1965 = vmatpush1.bf16.msra.mxu0 0
    %1966 = vmatprep.subr.bf16.mxu0 0
    %1967 = vmatpush1.bf16.msra.mxu0 0
    %1968 = vmatprep.mubr.bf16.mxu0 0
    %1969 = vmatmul.mubr.bf16.gmra.mrb[0].mxu0 %v1390
    %v1970 = vpop.f32.mrb[0].mxu0
    %v1971 = vadd.f32 %v1474, %v1970
    %v1972 = vpop.f32.mrb[0].mxu0
    %v1973 = vadd.f32 %v1478, %v1972
    %v1974 = vpop.f32.mrb[0].mxu0
    %v1975 = vadd.f32 %v1474, %v1974
    %v1976 = vpop.f32.mrb[0].mxu0
    %v1977 = vadd.f32 %v1478, %v1976
    %1978 = vmatprep.mubr.bf16.mxu0 0
    %1979 = vmatmul.mubr.bf16.gmra.mrb[0].mxu0 %v1391
    %v1980 = vpop.f32.mrb[0].mxu0
    %v1981 = vadd.f32 %v1474, %v1980
    %v1982 = vpop.f32.mrb[0].mxu0
    %v1983 = vadd.f32 %v1478, %v1982
    %v1984 = vpop.f32.mrb[0].mxu0
    %v1985 = vadd.f32 %v1474, %v1984
    %v1986 = vpop.f32.mrb[0].mxu0
    %v1987 = vadd.f32 %v1478, %v1986
    %1988 = vmatprep.mubr.bf16.mxu0 0
    %1989 = vmatmul.mubr.bf16.gmra.mrb[0].mxu0 %v1392
    %v1990 = vpop.f32.mrb[0].mxu0
    %v1991 = vadd.f32 %v1474, %v1990
    %v1992 = vpop.f32.mrb[0].mxu0
    %v1993 = vadd.f32 %v1478, %v1992
    %v1994 = vpop.f32.mrb[0].mxu0
    %v1995 = vadd.f32 %v1474, %v1994
    %v1996 = vpop.f32.mrb[0].mxu0
    %v1997 = vadd.f32 %v1478, %v1996
    %1998 = vmatprep.mubr.bf16.mxu0 0
    %1999 = vmatmul.mubr.bf16.gmra.mrb[0].mxu0 %v1393
    %v2000 = vpop.f32.mrb[0].mxu0
    %v2001 = vadd.f32 %v1474, %v2000
    %v2002 = vpop.f32.mrb[0].mxu0
    %v2003 = vadd.f32 %v1478, %v2002
    %v2004 = vpop.f32.mrb[0].mxu0
    %v2005 = vadd.f32 %v1474, %v2004
    %v2006 = vpop.f32.mrb[0].mxu0
    %v2007 = vadd.f32 %v1478, %v2006
    %2008 = vmatprep.mubr.bf16.mxu0 0
    %2009 = vmatmul.mubr.bf16.gmra.mrb[0].mxu0 %v1394
    %v2010 = vpop.f32.mrb[0].mxu0
    %v2011 = vadd.f32 %v1474, %v2010
    %v2012 = vpop.f32.mrb[0].mxu0
    %v2013 = vadd.f32 %v1478, %v2012
    %v2014 = vpop.f32.mrb[0].mxu0
    %v2015 = vadd.f32 %v1474, %v2014
    %v2016 = vpop.f32.mrb[0].mxu0
    %v2017 = vadd.f32 %v1478, %v2016
    %2018 = vmatprep.mubr.bf16.mxu0 0
    %2019 = vmatmul.mubr.bf16.gmra.mrb[0].mxu0 %v1395
    %v2020 = vpop.f32.mrb[0].mxu0
    %v2021 = vadd.f32 %v1474, %v2020
    %v2022 = vpop.f32.mrb[0].mxu0
    %v2023 = vadd.f32 %v1478, %v2022
    %v2024 = vpop.f32.mrb[0].mxu0
    %v2025 = vadd.f32 %v1474, %v2024
    %v2026 = vpop.f32.mrb[0].mxu0
    %v2027 = vadd.f32 %v1478, %v2026
    %2028 = vmatprep.mubr.bf16.mxu0 0
    %2029 = vmatmul.mubr.bf16.gmra.mrb[0].mxu0 %v1396
    %v2030 = vpop.f32.mrb[0].mxu0
    %v2031 = vadd.f32 %v1474, %v2030
    %v2032 = vpop.f32.mrb[0].mxu0
    %v2033 = vadd.f32 %v1478, %v2032
    %v2034 = vpop.f32.mrb[0].mxu0
    %v2035 = vadd.f32 %v1474, %v2034
    %v2036 = vpop.f32.mrb[0].mxu0
    %v2037 = vadd.f32 %v1478, %v2036
    %2038 = vmatprep.mubr.bf16.mxu0 0
    %2039 = vmatmul.mubr.bf16.gmra.mrb[0].mxu0 %v1397
    %v2040 = vpop.f32.mrb[0].mxu0
    %v2041 = vadd.f32 %v1474, %v2040
    %v2042 = vpop.f32.mrb[0].mxu0
    %v2043 = vadd.f32 %v1478, %v2042
    %v2044 = vpop.f32.mrb[0].mxu0
    %v2045 = vadd.f32 %v1474, %v2044
    %v2046 = vpop.f32.mrb[0].mxu0
    %v2047 = vadd.f32 %v1478, %v2046
    %2048 = vdwg.mxu0
    %2049 = vmatprep.subr.bf16.mxu0 %v1700
    %2050 = vmatpush1.bf16.msra.mxu0 %v1699
    %2051 = vmatprep.subr.bf16.mxu0 %v1708
    %2052 = vmatpush1.bf16.msra.mxu0 %v1707
    %2053 = vmatprep.subr.bf16.mxu0 %v1716
    %2054 = vmatpush1.bf16.msra.mxu0 %v1715
    %2055 = vmatprep.subr.bf16.mxu0 %v1724
    %2056 = vmatpush1.bf16.msra.mxu0 %v1723
    %2057 = vmatprep.subr.bf16.mxu0 %v1732
    %2058 = vmatpush1.bf16.msra.mxu0 %v1731
    %2059 = vmatprep.subr.bf16.mxu0 %v1740
    %2060 = vmatpush1.bf16.msra.mxu0 %v1739
    %2061 = vmatprep.subr.bf16.mxu0 %v1748
    %2062 = vmatpush1.bf16.msra.mxu0 %v1747
    %2063 = vmatprep.subr.bf16.mxu0 %v1756
    %2064 = vmatpush1.bf16.msra.mxu0 %v1755
    %2065 = vmatprep.subr.bf16.mxu0 0
    %2066 = vmatpush1.bf16.msra.mxu0 0
    %2067 = vmatprep.subr.bf16.mxu0 0
    %2068 = vmatpush1.bf16.msra.mxu0 0
    %2069 = vmatprep.subr.bf16.mxu0 0
    %2070 = vmatpush1.bf16.msra.mxu0 0
    %2071 = vmatprep.subr.bf16.mxu0 0
    %2072 = vmatpush1.bf16.msra.mxu0 0
    %2073 = vmatprep.subr.bf16.mxu0 0
    %2074 = vmatpush1.bf16.msra.mxu0 0
    %2075 = vmatprep.subr.bf16.mxu0 0
    %2076 = vmatpush1.bf16.msra.mxu0 0
    %2077 = vmatprep.subr.bf16.mxu0 0
    %2078 = vmatpush1.bf16.msra.mxu0 0
    %2079 = vmatprep.subr.bf16.mxu0 0
    %2080 = vmatpush1.bf16.msra.mxu0 0
    %2081 = vmatprep.mubr.bf16.mxu0 0
    %2082 = vmatmul.mubr.bf16.gmra.mrb[0].mxu0 %v1390
    %v2083 = vpop.f32.mrb[0].mxu0
    %v2084 = vadd.f32 %v1482, %v2083
    %v2085 = vpop.f32.mrb[0].mxu0
    %v2086 = vadd.f32 %v1486, %v2085
    %v2087 = vpop.f32.mrb[0].mxu0
    %v2088 = vadd.f32 %v1482, %v2087
    %v2089 = vpop.f32.mrb[0].mxu0
    %v2090 = vadd.f32 %v1486, %v2089
    %2091 = vmatprep.mubr.bf16.mxu0 0
    %2092 = vmatmul.mubr.bf16.gmra.mrb[0].mxu0 %v1391
    %v2093 = vpop.f32.mrb[0].mxu0
    %v2094 = vadd.f32 %v1482, %v2093
    %v2095 = vpop.f32.mrb[0].mxu0
    %v2096 = vadd.f32 %v1486, %v2095
    %v2097 = vpop.f32.mrb[0].mxu0
    %v2098 = vadd.f32 %v1482, %v2097
    %v2099 = vpop.f32.mrb[0].mxu0
    %v2100 = vadd.f32 %v1486, %v2099
    %2101 = vmatprep.mubr.bf16.mxu0 0
    %2102 = vmatmul.mubr.bf16.gmra.mrb[0].mxu0 %v1392
    %v2103 = vpop.f32.mrb[0].mxu0
    %v2104 = vadd.f32 %v1482, %v2103
    %v2105 = vpop.f32.mrb[0].mxu0
    %v2106 = vadd.f32 %v1486, %v2105
    %v2107 = vpop.f32.mrb[0].mxu0
    %v2108 = vadd.f32 %v1482, %v2107
    %v2109 = vpop.f32.mrb[0].mxu0
    %v2110 = vadd.f32 %v1486, %v2109
    %2111 = vmatprep.mubr.bf16.mxu0 0
    %2112 = vmatmul.mubr.bf16.gmra.mrb[0].mxu0 %v1393
    %v2113 = vpop.f32.mrb[0].mxu0
    %v2114 = vadd.f32 %v1482, %v2113
    %v2115 = vpop.f32.mrb[0].mxu0
    %v2116 = vadd.f32 %v1486, %v2115
    %v2117 = vpop.f32.mrb[0].mxu0
    %v2118 = vadd.f32 %v1482, %v2117
    %v2119 = vpop.f32.mrb[0].mxu0
    %v2120 = vadd.f32 %v1486, %v2119
    %2121 = vmatprep.mubr.bf16.mxu0 0
    %2122 = vmatmul.mubr.bf16.gmra.mrb[0].mxu0 %v1394
    %v2123 = vpop.f32.mrb[0].mxu0
    %v2124 = vadd.f32 %v1482, %v2123
    %v2125 = vpop.f32.mrb[0].mxu0
    %v2126 = vadd.f32 %v1486, %v2125
    %v2127 = vpop.f32.mrb[0].mxu0
    %v2128 = vadd.f32 %v1482, %v2127
    %v2129 = vpop.f32.mrb[0].mxu0
    %v2130 = vadd.f32 %v1486, %v2129
    %2131 = vmatprep.mubr.bf16.mxu0 0
    %2132 = vmatmul.mubr.bf16.gmra.mrb[0].mxu0 %v1395
    %v2133 = vpop.f32.mrb[0].mxu0
    %v2134 = vadd.f32 %v1482, %v2133
    %v2135 = vpop.f32.mrb[0].mxu0
    %v2136 = vadd.f32 %v1486, %v2135
    %v2137 = vpop.f32.mrb[0].mxu0
    %v2138 = vadd.f32 %v1482, %v2137
    %v2139 = vpop.f32.mrb[0].mxu0
    %v2140 = vadd.f32 %v1486, %v2139
    %2141 = vmatprep.mubr.bf16.mxu0 0
    %2142 = vmatmul.mubr.bf16.gmra.mrb[0].mxu0 %v1396
    %v2143 = vpop.f32.mrb[0].mxu0
    %v2144 = vadd.f32 %v1482, %v2143
    %v2145 = vpop.f32.mrb[0].mxu0
    %v2146 = vadd.f32 %v1486, %v2145
    %v2147 = vpop.f32.mrb[0].mxu0
    %v2148 = vadd.f32 %v1482, %v2147
    %v2149 = vpop.f32.mrb[0].mxu0
    %v2150 = vadd.f32 %v1486, %v2149
    %2151 = vmatprep.mubr.bf16.mxu0 0
    %2152 = vmatmul.mubr.bf16.gmra.mrb[0].mxu0 %v1397
    %v2153 = vpop.f32.mrb[0].mxu0
    %v2154 = vadd.f32 %v1482, %v2153
    %v2155 = vpop.f32.mrb[0].mxu0
    %v2156 = vadd.f32 %v1486, %v2155
    %v2157 = vpop.f32.mrb[0].mxu0
    %v2158 = vadd.f32 %v1482, %v2157
    %v2159 = vpop.f32.mrb[0].mxu0
    %v2160 = vadd.f32 %v1486, %v2159
    %2161 = vdwg.mxu0
    %2162 = vmatprep.subr.bf16.mxu0 %v1702
    %2163 = vmatpush1.bf16.msra.mxu0 %v1701
    %2164 = vmatprep.subr.bf16.mxu0 %v1710
    %2165 = vmatpush1.bf16.msra.mxu0 %v1709
    %2166 = vmatprep.subr.bf16.mxu0 %v1718
    %2167 = vmatpush1.bf16.msra.mxu0 %v1717
    %2168 = vmatprep.subr.bf16.mxu0 %v1726
    %2169 = vmatpush1.bf16.msra.mxu0 %v1725
    %2170 = vmatprep.subr.bf16.mxu0 %v1734
    %2171 = vmatpush1.bf16.msra.mxu0 %v1733
    %2172 = vmatprep.subr.bf16.mxu0 %v1742
    %2173 = vmatpush1.bf16.msra.mxu0 %v1741
    %2174 = vmatprep.subr.bf16.mxu0 %v1750
    %2175 = vmatpush1.bf16.msra.mxu0 %v1749
    %2176 = vmatprep.subr.bf16.mxu0 %v1758
    %2177 = vmatpush1.bf16.msra.mxu0 %v1757
    %2178 = vmatprep.subr.bf16.mxu0 0
    %2179 = vmatpush1.bf16.msra.mxu0 0
    %2180 = vmatprep.subr.bf16.mxu0 0
    %2181 = vmatpush1.bf16.msra.mxu0 0
    %2182 = vmatprep.subr.bf16.mxu0 0
    %2183 = vmatpush1.bf16.msra.mxu0 0
    %2184 = vmatprep.subr.bf16.mxu0 0
    %2185 = vmatpush1.bf16.msra.mxu0 0
    %2186 = vmatprep.subr.bf16.mxu0 0
    %2187 = vmatpush1.bf16.msra.mxu0 0
    %2188 = vmatprep.subr.bf16.mxu0 0
    %2189 = vmatpush1.bf16.msra.mxu0 0
    %2190 = vmatprep.subr.bf16.mxu0 0
    %2191 = vmatpush1.bf16.msra.mxu0 0
    %2192 = vmatprep.subr.bf16.mxu0 0
    %2193 = vmatpush1.bf16.msra.mxu0 0
    %2194 = vmatprep.mubr.bf16.mxu0 0
    %2195 = vmatmul.mubr.bf16.gmra.mrb[0].mxu0 %v1390
    %v2196 = vpop.f32.mrb[0].mxu0
    %v2197 = vadd.f32 %v1490, %v2196
    %v2198 = vpop.f32.mrb[0].mxu0
    %v2199 = vadd.f32 %v1494, %v2198
    %v2200 = vpop.f32.mrb[0].mxu0
    %v2201 = vadd.f32 %v1490, %v2200
    %v2202 = vpop.f32.mrb[0].mxu0
    %v2203 = vadd.f32 %v1494, %v2202
    %2204 = vmatprep.mubr.bf16.mxu0 0
    %2205 = vmatmul.mubr.bf16.gmra.mrb[0].mxu0 %v1391
    %v2206 = vpop.f32.mrb[0].mxu0
    %v2207 = vadd.f32 %v1490, %v2206
    %v2208 = vpop.f32.mrb[0].mxu0
    %v2209 = vadd.f32 %v1494, %v2208
    %v2210 = vpop.f32.mrb[0].mxu0
    %v2211 = vadd.f32 %v1490, %v2210
    %v2212 = vpop.f32.mrb[0].mxu0
    %v2213 = vadd.f32 %v1494, %v2212
    %2214 = vmatprep.mubr.bf16.mxu0 0
    %2215 = vmatmul.mubr.bf16.gmra.mrb[0].mxu0 %v1392
    %v2216 = vpop.f32.mrb[0].mxu0
    %v2217 = vadd.f32 %v1490, %v2216
    %v2218 = vpop.f32.mrb[0].mxu0
    %v2219 = vadd.f32 %v1494, %v2218
    %v2220 = vpop.f32.mrb[0].mxu0
    %v2221 = vadd.f32 %v1490, %v2220
    %v2222 = vpop.f32.mrb[0].mxu0
    %v2223 = vadd.f32 %v1494, %v2222
    %2224 = vmatprep.mubr.bf16.mxu0 0
    %2225 = vmatmul.mubr.bf16.gmra.mrb[0].mxu0 %v1393
    %v2226 = vpop.f32.mrb[0].mxu0
    %v2227 = vadd.f32 %v1490, %v2226
    %v2228 = vpop.f32.mrb[0].mxu0
    %v2229 = vadd.f32 %v1494, %v2228
    %v2230 = vpop.f32.mrb[0].mxu0
    %v2231 = vadd.f32 %v1490, %v2230
    %v2232 = vpop.f32.mrb[0].mxu0
    %v2233 = vadd.f32 %v1494, %v2232
    %2234 = vmatprep.mubr.bf16.mxu0 0
    %2235 = vmatmul.mubr.bf16.gmra.mrb[0].mxu0 %v1394
    %v2236 = vpop.f32.mrb[0].mxu0
    %v2237 = vadd.f32 %v1490, %v2236
    %v2238 = vpop.f32.mrb[0].mxu0
    %v2239 = vadd.f32 %v1494, %v2238
    %v2240 = vpop.f32.mrb[0].mxu0
    %v2241 = vadd.f32 %v1490, %v2240
    %v2242 = vpop.f32.mrb[0].mxu0
    %v2243 = vadd.f32 %v1494, %v2242
    %2244 = vmatprep.mubr.bf16.mxu0 0
    %2245 = vmatmul.mubr.bf16.gmra.mrb[0].mxu0 %v1395
    %v2246 = vpop.f32.mrb[0].mxu0
    %v2247 = vadd.f32 %v1490, %v2246
    %v2248 = vpop.f32.mrb[0].mxu0
    %v2249 = vadd.f32 %v1494, %v2248
    %v2250 = vpop.f32.mrb[0].mxu0
    %v2251 = vadd.f32 %v1490, %v2250
    %v2252 = vpop.f32.mrb[0].mxu0
    %v2253 = vadd.f32 %v1494, %v2252
    %2254 = vmatprep.mubr.bf16.mxu0 0
    %2255 = vmatmul.mubr.bf16.gmra.mrb[0].mxu0 %v1396
    %v2256 = vpop.f32.mrb[0].mxu0
    %v2257 = vadd.f32 %v1490, %v2256
    %v2258 = vpop.f32.mrb[0].mxu0
    %v2259 = vadd.f32 %v1494, %v2258
    %v2260 = vpop.f32.mrb[0].mxu0
    %v2261 = vadd.f32 %v1490, %v2260
    %v2262 = vpop.f32.mrb[0].mxu0
    %v2263 = vadd.f32 %v1494, %v2262
    %2264 = vmatprep.mubr.bf16.mxu0 0
    %2265 = vmatmul.mubr.bf16.gmra.mrb[0].mxu0 %v1397
    %v2266 = vpop.f32.mrb[0].mxu0
    %v2267 = vadd.f32 %v1490, %v2266
    %v2268 = vpop.f32.mrb[0].mxu0
    %v2269 = vadd.f32 %v1494, %v2268
    %v2270 = vpop.f32.mrb[0].mxu0
    %v2271 = vadd.f32 %v1490, %v2270
    %v2272 = vpop.f32.mrb[0].mxu0
    %v2273 = vadd.f32 %v1494, %v2272
    %2274 = vdwg.mxu0
    %2275 = vst [vmem:[#allocation8] sm:$0xff] %v1858
    %2276 = vst [vmem:[#allocation8 + $0x8] sm:$0xff] %v1860
    %2277 = vst [vmem:[#allocation8 + $0x10] sm:$0xff] %v1971
    %2278 = vst [vmem:[#allocation8 + $0x18] sm:$0xff] %v1973
    %2279 = vst [vmem:[#allocation8 + $0x20] sm:$0xff] %v2084
    %2280 = vst [vmem:[#allocation8 + $0x28] sm:$0xff] %v2086
    %2281 = vst [vmem:[#allocation8 + $0x30] sm:$0xff] %v2197
    %2282 = vst [vmem:[#allocation8 + $0x38] sm:$0xff] %v2199
    %2283 = vst [vmem:[#allocation8 + $0x40] sm:$0xff] %v1862
    %2284 = vst [vmem:[#allocation8 + $0x48] sm:$0xff] %v1864
    %2285 = vst [vmem:[#allocation8 + $0x50] sm:$0xff] %v1975
    %2286 = vst [vmem:[#allocation8 + $0x58] sm:$0xff] %v1977
    %2287 = vst [vmem:[#allocation8 + $0x60] sm:$0xff] %v2088
    %2288 = vst [vmem:[#allocation8 + $0x68] sm:$0xff] %v2090
    %2289 = vst [vmem:[#allocation8 + $0x70] sm:$0xff] %v2201
    %2290 = vst [vmem:[#allocation8 + $0x78] sm:$0xff] %v2203
    %2291 = vst [vmem:[#allocation8 + $0x80] sm:$0xff] %v1868
    %2292 = vst [vmem:[#allocation8 + $0x88] sm:$0xff] %v1870
    %2293 = vst [vmem:[#allocation8 + $0x90] sm:$0xff] %v1981
    %2294 = vst [vmem:[#allocation8 + $0x98] sm:$0xff] %v1983
    %2295 = vst [vmem:[#allocation8 + $0xa0] sm:$0xff] %v2094
    %2296 = vst [vmem:[#allocation8 + $0xa8] sm:$0xff] %v2096
    %2297 = vst [vmem:[#allocation8 + $0xb0] sm:$0xff] %v2207
    %2298 = vst [vmem:[#allocation8 + $0xb8] sm:$0xff] %v2209
    %2299 = vst [vmem:[#allocation8 + $0xc0] sm:$0xff] %v1872
    %2300 = vst [vmem:[#allocation8 + $0xc8] sm:$0xff] %v1874
    %2301 = vst [vmem:[#allocation8 + $0xd0] sm:$0xff] %v1985
    %2302 = vst [vmem:[#allocation8 + $0xd8] sm:$0xff] %v1987
    %2303 = vst [vmem:[#allocation8 + $0xe0] sm:$0xff] %v2098
    %2304 = vst [vmem:[#allocation8 + $0xe8] sm:$0xff] %v2100
    %2305 = vst [vmem:[#allocation8 + $0xf0] sm:$0xff] %v2211
    %2306 = vst [vmem:[#allocation8 + $0xf8] sm:$0xff] %v2213
    %2307 = vst [vmem:[#allocation8 + $0x100] sm:$0xff] %v1878
    %2308 = vst [vmem:[#allocation8 + $0x108] sm:$0xff] %v1880
    %2309 = vst [vmem:[#allocation8 + $0x110] sm:$0xff] %v1991
    %2310 = vst [vmem:[#allocation8 + $0x118] sm:$0xff] %v1993
    %2311 = vst [vmem:[#allocation8 + $0x120] sm:$0xff] %v2104
    %2312 = vst [vmem:[#allocation8 + $0x128] sm:$0xff] %v2106
    %2313 = vst [vmem:[#allocation8 + $0x130] sm:$0xff] %v2217
    %2314 = vst [vmem:[#allocation8 + $0x138] sm:$0xff] %v2219
    %2315 = vst [vmem:[#allocation8 + $0x140] sm:$0xff] %v1882
    %2316 = vst [vmem:[#allocation8 + $0x148] sm:$0xff] %v1884
    %2317 = vst [vmem:[#allocation8 + $0x150] sm:$0xff] %v1995
    %2318 = vst [vmem:[#allocation8 + $0x158] sm:$0xff] %v1997
    %2319 = vst [vmem:[#allocation8 + $0x160] sm:$0xff] %v2108
    %2320 = vst [vmem:[#allocation8 + $0x168] sm:$0xff] %v2110
    %2321 = vst [vmem:[#allocation8 + $0x170] sm:$0xff] %v2221
    %2322 = vst [vmem:[#allocation8 + $0x178] sm:$0xff] %v2223
    %2323 = vst [vmem:[#allocation8 + $0x180] sm:$0xff] %v1888
    %2324 = vst [vmem:[#allocation8 + $0x188] sm:$0xff] %v1890
    %2325 = vst [vmem:[#allocation8 + $0x190] sm:$0xff] %v2001
    %2326 = vst [vmem:[#allocation8 + $0x198] sm:$0xff] %v2003
    %2327 = vst [vmem:[#allocation8 + $0x1a0] sm:$0xff] %v2114
    %2328 = vst [vmem:[#allocation8 + $0x1a8] sm:$0xff] %v2116
    %2329 = vst [vmem:[#allocation8 + $0x1b0] sm:$0xff] %v2227
    %2330 = vst [vmem:[#allocation8 + $0x1b8] sm:$0xff] %v2229
    %2331 = vst [vmem:[#allocation8 + $0x1c0] sm:$0xff] %v1892
    %2332 = vst [vmem:[#allocation8 + $0x1c8] sm:$0xff] %v1894
    %2333 = vst [vmem:[#allocation8 + $0x1d0] sm:$0xff] %v2005
    %2334 = vst [vmem:[#allocation8 + $0x1d8] sm:$0xff] %v2007
    %2335 = vst [vmem:[#allocation8 + $0x1e0] sm:$0xff] %v2118
    %2336 = vst [vmem:[#allocation8 + $0x1e8] sm:$0xff] %v2120
    %2337 = vst [vmem:[#allocation8 + $0x1f0] sm:$0xff] %v2231
    %2338 = vst [vmem:[#allocation8 + $0x1f8] sm:$0xff] %v2233
    %2339 = vst [vmem:[#allocation8 + $0x200] sm:$0xff] %v1898
    %2340 = vst [vmem:[#allocation8 + $0x208] sm:$0xff] %v1900
    %2341 = vst [vmem:[#allocation8 + $0x210] sm:$0xff] %v2011
    %2342 = vst [vmem:[#allocation8 + $0x218] sm:$0xff] %v2013
    %2343 = vst [vmem:[#allocation8 + $0x220] sm:$0xff] %v2124
    %2344 = vst [vmem:[#allocation8 + $0x228] sm:$0xff] %v2126
    %2345 = vst [vmem:[#allocation8 + $0x230] sm:$0xff] %v2237
    %2346 = vst [vmem:[#allocation8 + $0x238] sm:$0xff] %v2239
    %2347 = vst [vmem:[#allocation8 + $0x240] sm:$0xff] %v1902
    %2348 = vst [vmem:[#allocation8 + $0x248] sm:$0xff] %v1904
    %2349 = vst [vmem:[#allocation8 + $0x250] sm:$0xff] %v2015
    %2350 = vst [vmem:[#allocation8 + $0x258] sm:$0xff] %v2017
    %2351 = vst [vmem:[#allocation8 + $0x260] sm:$0xff] %v2128
    %2352 = vst [vmem:[#allocation8 + $0x268] sm:$0xff] %v2130
    %2353 = vst [vmem:[#allocation8 + $0x270] sm:$0xff] %v2241
    %2354 = vst [vmem:[#allocation8 + $0x278] sm:$0xff] %v2243
    %2355 = vst [vmem:[#allocation8 + $0x280] sm:$0xff] %v1908
    %2356 = vst [vmem:[#allocation8 + $0x288] sm:$0xff] %v1910
    %2357 = vst [vmem:[#allocation8 + $0x290] sm:$0xff] %v2021
    %2358 = vst [vmem:[#allocation8 + $0x298] sm:$0xff] %v2023
    %2359 = vst [vmem:[#allocation8 + $0x2a0] sm:$0xff] %v2134
    %2360 = vst [vmem:[#allocation8 + $0x2a8] sm:$0xff] %v2136
    %2361 = vst [vmem:[#allocation8 + $0x2b0] sm:$0xff] %v2247
    %2362 = vst [vmem:[#allocation8 + $0x2b8] sm:$0xff] %v2249
    %2363 = vst [vmem:[#allocation8 + $0x2c0] sm:$0xff] %v1912
    %2364 = vst [vmem:[#allocation8 + $0x2c8] sm:$0xff] %v1914
    %2365 = vst [vmem:[#allocation8 + $0x2d0] sm:$0xff] %v2025
    %2366 = vst [vmem:[#allocation8 + $0x2d8] sm:$0xff] %v2027
    %2367 = vst [vmem:[#allocation8 + $0x2e0] sm:$0xff] %v2138
    %2368 = vst [vmem:[#allocation8 + $0x2e8] sm:$0xff] %v2140
    %2369 = vst [vmem:[#allocation8 + $0x2f0] sm:$0xff] %v2251
    %2370 = vst [vmem:[#allocation8 + $0x2f8] sm:$0xff] %v2253
    %2371 = vst [vmem:[#allocation8 + $0x300] sm:$0xff] %v1918
    %2372 = vst [vmem:[#allocation8 + $0x308] sm:$0xff] %v1920
    %2373 = vst [vmem:[#allocation8 + $0x310] sm:$0xff] %v2031
    %2374 = vst [vmem:[#allocation8 + $0x318] sm:$0xff] %v2033
    %2375 = vst [vmem:[#allocation8 + $0x320] sm:$0xff] %v2144
    %2376 = vst [vmem:[#allocation8 + $0x328] sm:$0xff] %v2146
    %2377 = vst [vmem:[#allocation8 + $0x330] sm:$0xff] %v2257
    %2378 = vst [vmem:[#allocation8 + $0x338] sm:$0xff] %v2259
    %2379 = vst [vmem:[#allocation8 + $0x340] sm:$0xff] %v1922
    %2380 = vst [vmem:[#allocation8 + $0x348] sm:$0xff] %v1924
    %2381 = vst [vmem:[#allocation8 + $0x350] sm:$0xff] %v2035
    %2382 = vst [vmem:[#allocation8 + $0x358] sm:$0xff] %v2037
    %2383 = vst [vmem:[#allocation8 + $0x360] sm:$0xff] %v2148
    %2384 = vst [vmem:[#allocation8 + $0x368] sm:$0xff] %v2150
    %2385 = vst [vmem:[#allocation8 + $0x370] sm:$0xff] %v2261
    %2386 = vst [vmem:[#allocation8 + $0x378] sm:$0xff] %v2263
    %2387 = vst [vmem:[#allocation8 + $0x380] sm:$0xff] %v1928
    %2388 = vst [vmem:[#allocation8 + $0x388] sm:$0xff] %v1930
    %2389 = vst [vmem:[#allocation8 + $0x390] sm:$0xff] %v2041
    %2390 = vst [vmem:[#allocation8 + $0x398] sm:$0xff] %v2043
    %2391 = vst [vmem:[#allocation8 + $0x3a0] sm:$0xff] %v2154
    %2392 = vst [vmem:[#allocation8 + $0x3a8] sm:$0xff] %v2156
    %2393 = vst [vmem:[#allocation8 + $0x3b0] sm:$0xff] %v2267
    %2394 = vst [vmem:[#allocation8 + $0x3b8] sm:$0xff] %v2269
    %2395 = vst [vmem:[#allocation8 + $0x3c0] sm:$0xff] %v1932
    %2396 = vst [vmem:[#allocation8 + $0x3c8] sm:$0xff] %v1934
    %2397 = vst [vmem:[#allocation8 + $0x3d0] sm:$0xff] %v2045
    %2398 = vst [vmem:[#allocation8 + $0x3d8] sm:$0xff] %v2047
    %2399 = vst [vmem:[#allocation8 + $0x3e0] sm:$0xff] %v2158
    %2400 = vst [vmem:[#allocation8 + $0x3e8] sm:$0xff] %v2160
    %2401 = vst [vmem:[#allocation8 + $0x3f0] sm:$0xff] %v2271
    %2402 = vst [vmem:[#allocation8 + $0x3f8] sm:$0xff] %v2273
    // Predicated region
    $region34: #{tpu_custom_call.1} parent=1 // pred_check
      _
    $region35: #{tpu_custom_call.1} parent=1 // pred_check_branch
      %2404 = sbr.rel (0) target = $region37
    $region36: #{tpu_custom_call.1} parent=1 // pred_region
      %s2406 = ssub.s32 16384, 16384
      %2407 = vsyncadd [#allocation4], %s2406
      %s2408 = sshll.u32 [#allocation8], 4
      %s2409 = int_to_ptr.vmem [resolvable:$true] %s2408
      %2414 = dma.vmem_to_hbm [thread:$0]  %s2409, 16384, %s5, [#allocation4], 1024, 1024, 64
    $region37: #{tpu_custom_call.1} parent=1 // pred_fallthru
      _
    // Predicated region
    $region38: #{tpu_custom_call.1} parent=1 // pred_check
      _
    $region39: #{tpu_custom_call.1} parent=1 // pred_check_branch
      %2416 = sbr.rel (0) target = $region41
    $region40: #{tpu_custom_call.1} parent=1 // pred_region
      %s2418 = ssub.s32 2048, 2048
      %2419 = vsyncadd [#allocation10], %s2418
      %s2420 = sshll.u32 [#allocation9], 4
      %s2421 = int_to_ptr.vmem [resolvable:$true] %s2420
      %2426 = dma.vmem_to_hbm [thread:$0]  %s2421, 2048, %s6, [#allocation10], 128, 128, 8
    $region41: #{tpu_custom_call.1} parent=1 // pred_fallthru
      _
    // Predicated region
    $region42: #{tpu_custom_call.1} parent=1 // pred_check
      _
    $region43: #{tpu_custom_call.1} parent=1 // pred_check_branch
      %2428 = sbr.rel (0) target = $region45
    $region44: #{tpu_custom_call.1} parent=1 // pred_region
      %2429 = dma.done [#allocation4], 16384
    $region45: #{tpu_custom_call.1} parent=1 // pred_fallthru
      _
    // Predicated region
    $region46: #{tpu_custom_call.1} parent=1 // pred_check
      _
    $region47: #{tpu_custom_call.1} parent=1 // pred_check_branch
      %2431 = sbr.rel (0) target = $region49
    $region48: #{tpu_custom_call.1} parent=1 // pred_region
      %2432 = dma.done [#allocation10], 2048
    $region49: #{tpu_custom_call.1} parent=1 // pred_fallthru
      _
    %2433 = vsyncpa [#allocation3], 1
    %2434 = vsyncpa [#allocation6], 1
    %2435 = vsyncpa [#allocation4], 1
    %2436 = vsyncpa [#allocation10], 1

</llo_original>
